<compile_context>
chip_gen: v6e
topology: v6e:2x2x1
jax: 0.10.0
libtpu: 0.0.40
codegen_flags: <defaults>
</compile_context>

<pallas_src>
import jax
import jax.numpy as jnp
import numpy as np
from jax import lax
from jax.experimental import pallas as pl
from jax.experimental.pallas import tpu as pltpu


def _bottleneck_kernel(x_ref, halo_ref, w1_ref, b1_ref, w2_ref, b2_ref,
                       w3_ref, b3_ref, wp_ref, o_ref, acc_ref, res_ref):
    TH, W, Cin = x_ref.shape
    Chid = w1_ref.shape[1]
    Cout = w3_ref.shape[1]
    r = pl.program_id(1)
    n_r = pl.num_programs(1)

    # ---- consume the x tile immediately (short live range for xf) ----------
    x_bf = x_ref[...].reshape(TH * W, Cin).astype(jnp.bfloat16)

    # projection branch (1x1, no bias) -> park in VMEM, free the vregs.
    res_ref[...] = jnp.dot(x_bf, wp_ref[...], preferred_element_type=jnp.float32)

    # conv1 (1x1 + bias + ReLU6) on the TH main rows.
    h1_main = jnp.dot(x_bf, w1_ref[...], preferred_element_type=jnp.float32)
    h1_main = jnp.clip(h1_main + b1_ref[...], 0.0, 6.0).reshape(TH, W, Chid)

    # conv1 on the two halo rows; zero them at the image top/bottom so they
    # become conv2's zero padding of h1 (ReLU6(b1) != 0, so masking is needed).
    halo_bf = halo_ref[...].reshape(2 * W, Cin).astype(jnp.bfloat16)
    h1_halo = jnp.dot(halo_bf, w1_ref[...], preferred_element_type=jnp.float32)
    h1_halo = jnp.clip(h1_halo + b1_ref[...], 0.0, 6.0).reshape(2, W, Chid)
    top = h1_halo[0:1] * (r > 0).astype(jnp.float32)
    bot = h1_halo[1:2] * (r < n_r - 1).astype(jnp.float32)

    h1_ext = jnp.concatenate([top, h1_main, bot], axis=0)        # (TH+2, W, Chid)

    # ---- conv2 (3x3, pad=1): fold the dx taps into the contraction dim -----
    zcol = jnp.zeros((TH + 2, 1, Chid), jnp.float32)
    left_nb = jnp.concatenate([zcol, h1_ext[:, :W - 1, :]], axis=1)   # value at x-1 (kx=0)
    right_nb = jnp.concatenate([h1_ext[:, 1:, :], zcol], axis=1)      # value at x+1 (kx=2)
    hcat = jnp.concatenate([left_nb, h1_ext, right_nb],
                           axis=-1).astype(jnp.bfloat16)              # (TH+2, W, 3*Chid)

    # three dy taps = three leading-axis slices, K = 3*Chid, f32 acc in VMEM.
    acc_ref[...] = jnp.dot(hcat[0:TH].reshape(TH * W, 3 * Chid), w2_ref[0],
                           preferred_element_type=jnp.float32)
    acc_ref[...] += jnp.dot(hcat[1:TH + 1].reshape(TH * W, 3 * Chid), w2_ref[1],
                            preferred_element_type=jnp.float32)
    acc_ref[...] += jnp.dot(hcat[2:TH + 2].reshape(TH * W, 3 * Chid), w2_ref[2],
                            preferred_element_type=jnp.float32)

    # ---- conv2 bias, conv3 (1x1 + bias), residual add, final ReLU6 ---------
    h2 = (acc_ref[...] + b2_ref[...]).astype(jnp.bfloat16)
    h3 = jnp.dot(h2, w3_ref[...], preferred_element_type=jnp.float32) + b3_ref[...]
    out = jnp.clip(res_ref[...] + h3, 0.0, 6.0)
    o_ref[...] = out.reshape(TH, W, Cout).astype(o_ref.dtype)


def _pick_tile_rows(H, W, cin, chid, cout):
    """Largest divisor of H whose f32 working set stays around ~2 MiB/tile."""
    bytes_per_row = W * (cin + cout + 5 * chid) * 4
    target = max(1, min(H, (2 * 2 ** 20) // max(bytes_per_row, 1)))
    for th in range(target, 0, -1):
        if H % th == 0:
            return th
    return H


def _vmem_limit(TH, W, cin, chid, cout):
    """Explicit scoped-VMEM budget with headroom (safe on v5e/v6e/v7x)."""
    f32, bf16 = 4, 2
    x_blk = TH * W * cin * f32
    halo_blk = 2 * W * cin * f32
    out_blk = TH * W * cout * f32
    scratch = TH * W * (chid + cout) * f32
    slab = (TH + 2) * W * 3 * chid * (f32 + bf16)          # h1_ext f32 + hcat bf16
    weights = (cin * chid + 9 * chid * chid + chid * cout + cin * cout) * bf16 \
        + (2 * chid + cout) * f32
    est = 2 * (x_blk + halo_blk + out_blk) + 2 * weights + scratch + 3 * slab
    return int(min(48 * 2 ** 20, max(32 * 2 ** 20, 2 * est)))


def conv_bottleneck_residual_block_2d_nhwc(x_nhwc, params, *, tile_rows=None):
    """x_nhwc: (B, H, W, Cin) float32.  Returns (B, H, W, Cout)."""
    w1, b1 = params["w1"], params["b1"]      # (Cin, Chid), (1, Chid)
    w2, b2 = params["w2"], params["b2"]      # (3, 3, Chid, Chid), (1, Chid)
    w3, b3 = params["w3"], params["b3"]      # (Chid, Cout), (1, Cout)
    wp = params["wp"]                        # (Cin, Cout)

    B, H, W, Cin = x_nhwc.shape
    Chid = w1.shape[1]
    Cout = w3.shape[1]

    TH = tile_rows if tile_rows is not None else _pick_tile_rows(H, W, Cin, Chid, Cout)
    assert H % TH == 0, "tile_rows must divide H"
    n_tiles = H // TH

    # Halo rows (row above / below each row tile; zeros at the image border —
    # the kernel additionally zeroes the corresponding h1 rows).
    row0 = jnp.arange(n_tiles) * TH
    top_idx = jnp.clip(row0 - 1, 0, H - 1)
    bot_idx = jnp.clip(row0 + TH, 0, H - 1)
    top = jnp.where((row0 - 1 >= 0)[None, :, None, None], x_nhwc[:, top_idx], 0.0)
    bot = jnp.where((row0 + TH < H)[None, :, None, None], x_nhwc[:, bot_idx], 0.0)
    halo = jnp.stack([top, bot], axis=2)                 # (B, n_tiles, 2, W, Cin)

    # Fold conv2's width taps into the contraction dim: (ky, kx*cin, cout).
    w2r = w2.reshape(3, 3 * Chid, Chid)
    # bf16 matmul operands (f32 accumulation / bias / activation stay f32).
    w1b = w1.astype(jnp.bfloat16)
    w2b = w2r.astype(jnp.bfloat16)
    w3b = w3.astype(jnp.bfloat16)
    wpb = wp.astype(jnp.bfloat16)

    grid_spec = pltpu.PrefetchScalarGridSpec(
        num_scalar_prefetch=0,
        grid=(B, n_tiles),
        in_specs=[
            pl.BlockSpec((None, TH, W, Cin), lambda b, r: (b, r, 0, 0)),
            pl.BlockSpec((None, None, 2, W, Cin), lambda b, r: (b, r, 0, 0, 0)),
            # Grid-invariant weights/biases: constant index maps, fetched once.
            pl.BlockSpec((Cin, Chid), lambda b, r: (0, 0)),
            pl.BlockSpec((1, Chid), lambda b, r: (0, 0)),
            pl.BlockSpec((3, 3 * Chid, Chid), lambda b, r: (0, 0, 0)),
            pl.BlockSpec((1, Chid), lambda b, r: (0, 0)),
            pl.BlockSpec((Chid, Cout), lambda b, r: (0, 0)),
            pl.BlockSpec((1, Cout), lambda b, r: (0, 0)),
            pl.BlockSpec((Cin, Cout), lambda b, r: (0, 0)),
        ],
        out_specs=pl.BlockSpec((None, TH, W, Cout), lambda b, r: (b, r, 0, 0)),
        scratch_shapes=[
            pltpu.VMEM((TH * W, Chid), jnp.float32),     # conv2 accumulator
            pltpu.VMEM((TH * W, Cout), jnp.float32),     # projection branch
        ],
    )

    out = pl.pallas_call(
        _bottleneck_kernel,
        out_shape=jax.ShapeDtypeStruct((B, H, W, Cout), x_nhwc.dtype),
        grid_spec=grid_spec,
        compiler_params=pltpu.CompilerParams(
            dimension_semantics=("parallel", "parallel"),
            vmem_limit_bytes=_vmem_limit(TH, W, Cin, Chid, Cout)),
    )(x_nhwc, halo, w1b, b1, w2b, b2, w3b, b3, wpb)
    return out


def conv_bottleneck_residual_block_2d(x_nchw, params, *, tile_rows=None):
    """NCHW adapter for PyTorch-layout callers (adds two HBM transpose passes;
    prefer the NHWC entry point)."""
    x = jnp.transpose(x_nchw, (0, 2, 3, 1))
    y = conv_bottleneck_residual_block_2d_nhwc(x, params, tile_rows=tile_rows)
    return jnp.transpose(y, (0, 3, 1, 2))


def _make_params(key, in_channels, reduction_ratio, out_channels=None):
    chid = in_channels // reduction_ratio
    assert chid != 0
    cout = in_channels if out_channels is None else out_channels
    ks = jax.random.split(key, 7)
    s = 0.1
    return {
        "w1": s * jax.random.normal(ks[0], (in_channels, chid), jnp.float32),
        "b1": s * jax.random.normal(ks[1], (1, chid), jnp.float32),
        "w2": s * jax.random.normal(ks[2], (3, 3, chid, chid), jnp.float32),
        "b2": s * jax.random.normal(ks[3], (1, chid), jnp.float32),
        "w3": s * jax.random.normal(ks[4], (chid, cout), jnp.float32),
        "b3": s * jax.random.normal(ks[5], (1, cout), jnp.float32),
        "wp": s * jax.random.normal(ks[6], (in_channels, cout), jnp.float32),
    }


def _ref_forward_nhwc(x, params):
    """Pure-JAX f32 reference (lax conv, NHWC) mirroring the PyTorch forward."""
    def conv(v, w_hwio, pad):
        return lax.conv_general_dilated(
            v, w_hwio, window_strides=(1, 1),
            padding=[(pad, pad), (pad, pad)],
            dimension_numbers=("NHWC", "HWIO", "NHWC"))

    w1 = params["w1"][None, None]
    w3 = params["w3"][None, None]
    wp = params["wp"][None, None]
    b1 = params["b1"].reshape(1, 1, 1, -1)
    b2 = params["b2"].reshape(1, 1, 1, -1)
    b3 = params["b3"].reshape(1, 1, 1, -1)

    h = jnp.clip(conv(x, w1, 0) + b1, 0.0, 6.0)
    h = conv(h, params["w2"], 1) + b2
    h = conv(h, w3, 0) + b3
    p = conv(x, wp, 0)
    return jnp.clip(p + h, 0.0, 6.0)


if __name__ == "__main__":
    key = jax.random.PRNGKey(0)
    kx, kp = jax.random.split(key)

    B, H, W, Cin = 2, 16, 16, 4
    reduction_ratio = 2

    x = jax.random.normal(kx, (B, H, W, Cin), jnp.float32)
    params = _make_params(kp, Cin, reduction_ratio, out_channels=None)

    # tile_rows=8 -> 2 row tiles per image: exercises the halo + boundary masks.
    fwd = jax.jit(lambda x_, p_: conv_bottleneck_residual_block_2d_nhwc(
        x_, p_, tile_rows=8))
    out = jax.block_until_ready(fwd(x, params))

    ref = jax.block_until_ready(_ref_forward_nhwc(x, params))
    # bf16 matmul operands with f32 accumulation -> loose-ish tolerance.
    np.testing.assert_allclose(np.asarray(out), np.asarray(ref),
                               rtol=2e-2, atol=2e-2)

    print("KERNEL_OK")
</pallas_src>

<mosaic_0001>
module attributes {stable_mosaic.version = 11 : i64} {
  func.func @_bottleneck_kernel(%arg0: i32, %arg1: i32, %arg2: memref<1x8x16x4xf32, #tpu.memory_space<vmem>>, %arg3: memref<1x1x2x16x4xf32, #tpu.memory_space<vmem>>, %arg4: memref<4x2xbf16, #tpu.memory_space<vmem>>, %arg5: memref<1x2xf32, #tpu.memory_space<vmem>>, %arg6: memref<3x6x2xbf16, #tpu.memory_space<vmem>>, %arg7: memref<1x2xf32, #tpu.memory_space<vmem>>, %arg8: memref<2x4xbf16, #tpu.memory_space<vmem>>, %arg9: memref<1x4xf32, #tpu.memory_space<vmem>>, %arg10: memref<4x4xbf16, #tpu.memory_space<vmem>>, %arg11: memref<1x8x16x4xf32, #tpu.memory_space<vmem>>, %arg12: memref<128x2xf32, #tpu.memory_space<vmem>>, %arg13: memref<128x4xf32, #tpu.memory_space<vmem>>) attributes {dimension_semantics = [#tpu.dimension_semantics<parallel>, #tpu.dimension_semantics<parallel>], iteration_bounds = array<i64: 2, 2>, scalar_prefetch = 0 : i64, scratch_operands = 2 : i64, tpu.core_type = #tpu.core_type<tc>, window_params = [{transform_indices = @transform_0, window_bounds = array<i64: 1, 8, 16, 4>}, {transform_indices = @transform_1, window_bounds = array<i64: 1, 1, 2, 16, 4>}, {pipeline_mode = #tpu.pipeline_mode<synchronous>, transform_indices = @transform_2, window_bounds = array<i64: 4, 2>}, {pipeline_mode = #tpu.pipeline_mode<synchronous>, transform_indices = @transform_3, window_bounds = array<i64: 1, 2>}, {pipeline_mode = #tpu.pipeline_mode<synchronous>, transform_indices = @transform_4, window_bounds = array<i64: 3, 6, 2>}, {pipeline_mode = #tpu.pipeline_mode<synchronous>, transform_indices = @transform_5, window_bounds = array<i64: 1, 2>}, {pipeline_mode = #tpu.pipeline_mode<synchronous>, transform_indices = @transform_6, window_bounds = array<i64: 2, 4>}, {pipeline_mode = #tpu.pipeline_mode<synchronous>, transform_indices = @transform_7, window_bounds = array<i64: 1, 4>}, {pipeline_mode = #tpu.pipeline_mode<synchronous>, transform_indices = @transform_8, window_bounds = array<i64: 4, 4>}, {transform_indices = @transform_9, window_bounds = array<i64: 1, 8, 16, 4>}]} {
    %c0 = arith.constant 0 : index
    %c0_0 = arith.constant 0 : index
    %c0_1 = arith.constant 0 : index
    %c0_2 = arith.constant 0 : index
    %0 = vector.load %arg2[%c0, %c0_0, %c0_1, %c0_2] : memref<1x8x16x4xf32, #tpu.memory_space<vmem>>, vector<1x8x16x4xf32>
    %1 = vector.shape_cast %0 : vector<1x8x16x4xf32> to vector<8x16x4xf32>
    %2 = vector.shape_cast %1 : vector<8x16x4xf32> to vector<128x4xf32>
    %3 = arith.truncf %2 : vector<128x4xf32> to vector<128x4xbf16>
    %c0_3 = arith.constant 0 : index
    %c0_4 = arith.constant 0 : index
    %4 = vector.load %arg10[%c0_3, %c0_4] : memref<4x4xbf16, #tpu.memory_space<vmem>>, vector<4x4xbf16>
    %cst = arith.constant dense<0.000000e+00> : vector<128x4xf32>
    %5 = tpu.matmul %3, %4, %cst {dimension_numbers = #tpu.dot_dimension_numbers<[1], [0], [0], [1], [0, 0, 1, 1], [], []>} : vector<128x4xbf16>, vector<4x4xbf16>, vector<128x4xf32> -> vector<128x4xf32>
    %c0_5 = arith.constant 0 : index
    %c0_6 = arith.constant 0 : index
    %6 = vector.load %arg13[%c0_5, %c0_6] : memref<128x4xf32, #tpu.memory_space<vmem>>, vector<128x4xf32>
    tpu.vector_store %arg13[%c0_5, %c0_6], %5 {strides = array<i32>} : memref<128x4xf32, #tpu.memory_space<vmem>>, vector<128x4xf32>,
    %c0_7 = arith.constant 0 : index
    %c0_8 = arith.constant 0 : index
    %7 = vector.load %arg4[%c0_7, %c0_8] : memref<4x2xbf16, #tpu.memory_space<vmem>>, vector<4x2xbf16>
    %cst_9 = arith.constant dense<0.000000e+00> : vector<128x2xf32>
    %8 = tpu.matmul %3, %7, %cst_9 {dimension_numbers = #tpu.dot_dimension_numbers<[1], [0], [0], [1], [0, 0, 1, 1], [], []>} : vector<128x4xbf16>, vector<4x2xbf16>, vector<128x2xf32> -> vector<128x2xf32>
    %c0_10 = arith.constant 0 : index
    %c0_11 = arith.constant 0 : index
    %9 = vector.load %arg5[%c0_10, %c0_11] : memref<1x2xf32, #tpu.memory_space<vmem>>, vector<1x2xf32>
    %10 = vector.broadcast %9 : vector<1x2xf32> to vector<128x2xf32>
    %11 = arith.addf %8, %10 : vector<128x2xf32>
    %cst_12 = arith.constant 0.000000e+00 : f32
    %cst_13 = arith.constant 6.000000e+00 : f32
    %12 = vector.broadcast %cst_12 : f32 to vector<128x2xf32>
    %13 = arith.maximumf %12, %11 : vector<128x2xf32>
    %14 = vector.broadcast %cst_13 : f32 to vector<128x2xf32>
    %15 = arith.minimumf %14, %13 : vector<128x2xf32>
    %16 = vector.shape_cast %15 : vector<128x2xf32> to vector<8x16x2xf32>
    %c0_14 = arith.constant 0 : index
    %c0_15 = arith.constant 0 : index
    %c0_16 = arith.constant 0 : index
    %c0_17 = arith.constant 0 : index
    %c0_18 = arith.constant 0 : index
    %17 = vector.load %arg3[%c0_14, %c0_15, %c0_16, %c0_17, %c0_18] : memref<1x1x2x16x4xf32, #tpu.memory_space<vmem>>, vector<1x1x2x16x4xf32>
    %18 = vector.shape_cast %17 : vector<1x1x2x16x4xf32> to vector<2x16x4xf32>
    %19 = vector.shape_cast %18 : vector<2x16x4xf32> to vector<32x4xf32>
    %20 = arith.truncf %19 : vector<32x4xf32> to vector<32x4xbf16>
    %c0_19 = arith.constant 0 : index
    %c0_20 = arith.constant 0 : index
    %21 = vector.load %arg4[%c0_19, %c0_20] : memref<4x2xbf16, #tpu.memory_space<vmem>>, vector<4x2xbf16>
    %cst_21 = arith.constant dense<0.000000e+00> : vector<32x2xf32>
    %22 = tpu.matmul %20, %21, %cst_21 {dimension_numbers = #tpu.dot_dimension_numbers<[1], [0], [0], [1], [0, 0, 1, 1], [], []>} : vector<32x4xbf16>, vector<4x2xbf16>, vector<32x2xf32> -> vector<32x2xf32>
    %c0_22 = arith.constant 0 : index
    %c0_23 = arith.constant 0 : index
    %23 = vector.load %arg5[%c0_22, %c0_23] : memref<1x2xf32, #tpu.memory_space<vmem>>, vector<1x2xf32>
    %24 = vector.broadcast %23 : vector<1x2xf32> to vector<32x2xf32>
    %25 = arith.addf %22, %24 : vector<32x2xf32>
    %cst_24 = arith.constant 0.000000e+00 : f32
    %cst_25 = arith.constant 6.000000e+00 : f32
    %26 = vector.broadcast %cst_24 : f32 to vector<32x2xf32>
    %27 = arith.maximumf %26, %25 : vector<32x2xf32>
    %28 = vector.broadcast %cst_25 : f32 to vector<32x2xf32>
    %29 = arith.minimumf %28, %27 : vector<32x2xf32>
    %30 = vector.shape_cast %29 : vector<32x2xf32> to vector<2x16x2xf32>
    %31 = vector.extract_strided_slice %30 {offsets = [0, 0, 0], sizes = [1, 16, 2], strides = [1, 1, 1]} : vector<2x16x2xf32> to vector<1x16x2xf32>
    %c0_i32 = arith.constant 0 : i32
    %32 = arith.cmpi sgt, %arg1, %c0_i32 : i32
    %33 = arith.extui %32 : i1 to i32
    %34 = arith.sitofp %33 : i32 to f32
    %35 = vector.broadcast %34 : f32 to vector<1x16x2xf32>
    %36 = arith.mulf %31, %35 : vector<1x16x2xf32>
    %37 = vector.extract_strided_slice %30 {offsets = [1, 0, 0], sizes = [1, 16, 2], strides = [1, 1, 1]} : vector<2x16x2xf32> to vector<1x16x2xf32>
    %c1_i32 = arith.constant 1 : i32
    %38 = arith.cmpi slt, %arg1, %c1_i32 : i32
    %39 = arith.extui %38 : i1 to i32
    %40 = arith.sitofp %39 : i32 to f32
    %41 = vector.broadcast %40 : f32 to vector<1x16x2xf32>
    %42 = arith.mulf %37, %41 : vector<1x16x2xf32>
    %43 = tpu.concatenate %36, %16, %42 in 0 : vector<1x16x2xf32>, vector<8x16x2xf32>, vector<1x16x2xf32> -> vector<10x16x2xf32>
    %cst_26 = arith.constant 0.000000e+00 : f32
    %44 = vector.broadcast %cst_26 : f32 to vector<10x1x2xf32>
    %45 = vector.extract_strided_slice %43 {offsets = [0, 0, 0], sizes = [10, 15, 2], strides = [1, 1, 1]} : vector<10x16x2xf32> to vector<10x15x2xf32>
    %46 = tpu.concatenate %44, %45 in 1 : vector<10x1x2xf32>, vector<10x15x2xf32> -> vector<10x16x2xf32>
    %47 = vector.extract_strided_slice %43 {offsets = [0, 1, 0], sizes = [10, 15, 2], strides = [1, 1, 1]} : vector<10x16x2xf32> to vector<10x15x2xf32>
    %48 = tpu.concatenate %47, %44 in 1 : vector<10x15x2xf32>, vector<10x1x2xf32> -> vector<10x16x2xf32>
    %49 = tpu.concatenate %46, %43, %48 in 2 : vector<10x16x2xf32>, vector<10x16x2xf32>, vector<10x16x2xf32> -> vector<10x16x6xf32>
    %50 = arith.truncf %49 : vector<10x16x6xf32> to vector<10x16x6xbf16>
    %51 = vector.extract_strided_slice %50 {offsets = [0, 0, 0], sizes = [8, 16, 6], strides = [1, 1, 1]} : vector<10x16x6xbf16> to vector<8x16x6xbf16>
    %52 = vector.shape_cast %51 : vector<8x16x6xbf16> to vector<128x6xbf16>
    %c0_27 = arith.constant 0 : index
    %c0_28 = arith.constant 0 : index
    %c0_29 = arith.constant 0 : index
    %53 = vector.load %arg6[%c0_27, %c0_28, %c0_29] : memref<3x6x2xbf16, #tpu.memory_space<vmem>>, vector<1x6x2xbf16>
    %54 = vector.shape_cast %53 : vector<1x6x2xbf16> to vector<6x2xbf16>
    %cst_30 = arith.constant dense<0.000000e+00> : vector<128x2xf32>
    %55 = tpu.matmul %52, %54, %cst_30 {dimension_numbers = #tpu.dot_dimension_numbers<[1], [0], [0], [1], [0, 0, 1, 1], [], []>} : vector<128x6xbf16>, vector<6x2xbf16>, vector<128x2xf32> -> vector<128x2xf32>
    %c0_31 = arith.constant 0 : index
    %c0_32 = arith.constant 0 : index
    %56 = vector.load %arg12[%c0_31, %c0_32] : memref<128x2xf32, #tpu.memory_space<vmem>>, vector<128x2xf32>
    tpu.vector_store %arg12[%c0_31, %c0_32], %55 {strides = array<i32>} : memref<128x2xf32, #tpu.memory_space<vmem>>, vector<128x2xf32>,
    %c0_33 = arith.constant 0 : index
    %c0_34 = arith.constant 0 : index
    %57 = vector.load %arg12[%c0_33, %c0_34] : memref<128x2xf32, #tpu.memory_space<vmem>>, vector<128x2xf32>
    %58 = vector.extract_strided_slice %50 {offsets = [1, 0, 0], sizes = [8, 16, 6], strides = [1, 1, 1]} : vector<10x16x6xbf16> to vector<8x16x6xbf16>
    %59 = vector.shape_cast %58 : vector<8x16x6xbf16> to vector<128x6xbf16>
    %c1 = arith.constant 1 : index
    %c0_35 = arith.constant 0 : index
    %c0_36 = arith.constant 0 : index
    %60 = vector.load %arg6[%c1, %c0_35, %c0_36] : memref<3x6x2xbf16, #tpu.memory_space<vmem>>, vector<1x6x2xbf16>
    %61 = vector.shape_cast %60 : vector<1x6x2xbf16> to vector<6x2xbf16>
    %cst_37 = arith.constant dense<0.000000e+00> : vector<128x2xf32>
    %62 = tpu.matmul %59, %61, %cst_37 {dimension_numbers = #tpu.dot_dimension_numbers<[1], [0], [0], [1], [0, 0, 1, 1], [], []>} : vector<128x6xbf16>, vector<6x2xbf16>, vector<128x2xf32> -> vector<128x2xf32>
    %63 = arith.addf %57, %62 : vector<128x2xf32>
    %c0_38 = arith.constant 0 : index
    %c0_39 = arith.constant 0 : index
    %64 = vector.load %arg12[%c0_38, %c0_39] : memref<128x2xf32, #tpu.memory_space<vmem>>, vector<128x2xf32>
    tpu.vector_store %arg12[%c0_38, %c0_39], %63 {strides = array<i32>} : memref<128x2xf32, #tpu.memory_space<vmem>>, vector<128x2xf32>,
    %c0_40 = arith.constant 0 : index
    %c0_41 = arith.constant 0 : index
    %65 = vector.load %arg12[%c0_40, %c0_41] : memref<128x2xf32, #tpu.memory_space<vmem>>, vector<128x2xf32>
    %66 = vector.extract_strided_slice %50 {offsets = [2, 0, 0], sizes = [8, 16, 6], strides = [1, 1, 1]} : vector<10x16x6xbf16> to vector<8x16x6xbf16>
    %67 = vector.shape_cast %66 : vector<8x16x6xbf16> to vector<128x6xbf16>
    %c2 = arith.constant 2 : index
    %c0_42 = arith.constant 0 : index
    %c0_43 = arith.constant 0 : index
    %68 = vector.load %arg6[%c2, %c0_42, %c0_43] : memref<3x6x2xbf16, #tpu.memory_space<vmem>>, vector<1x6x2xbf16>
    %69 = vector.shape_cast %68 : vector<1x6x2xbf16> to vector<6x2xbf16>
    %cst_44 = arith.constant dense<0.000000e+00> : vector<128x2xf32>
    %70 = tpu.matmul %67, %69, %cst_44 {dimension_numbers = #tpu.dot_dimension_numbers<[1], [0], [0], [1], [0, 0, 1, 1], [], []>} : vector<128x6xbf16>, vector<6x2xbf16>, vector<128x2xf32> -> vector<128x2xf32>
    %71 = arith.addf %65, %70 : vector<128x2xf32>
    %c0_45 = arith.constant 0 : index
    %c0_46 = arith.constant 0 : index
    %72 = vector.load %arg12[%c0_45, %c0_46] : memref<128x2xf32, #tpu.memory_space<vmem>>, vector<128x2xf32>
    tpu.vector_store %arg12[%c0_45, %c0_46], %71 {strides = array<i32>} : memref<128x2xf32, #tpu.memory_space<vmem>>, vector<128x2xf32>,
    %c0_47 = arith.constant 0 : index
    %c0_48 = arith.constant 0 : index
    %73 = vector.load %arg12[%c0_47, %c0_48] : memref<128x2xf32, #tpu.memory_space<vmem>>, vector<128x2xf32>
    %c0_49 = arith.constant 0 : index
    %c0_50 = arith.constant 0 : index
    %74 = vector.load %arg7[%c0_49, %c0_50] : memref<1x2xf32, #tpu.memory_space<vmem>>, vector<1x2xf32>
    %75 = vector.broadcast %74 : vector<1x2xf32> to vector<128x2xf32>
    %76 = arith.addf %73, %75 : vector<128x2xf32>
    %77 = arith.truncf %76 : vector<128x2xf32> to vector<128x2xbf16>
    %c0_51 = arith.constant 0 : index
    %c0_52 = arith.constant 0 : index
    %78 = vector.load %arg8[%c0_51, %c0_52] : memref<2x4xbf16, #tpu.memory_space<vmem>>, vector<2x4xbf16>
    %cst_53 = arith.constant dense<0.000000e+00> : vector<128x4xf32>
    %79 = tpu.matmul %77, %78, %cst_53 {dimension_numbers = #tpu.dot_dimension_numbers<[1], [0], [0], [1], [0, 0, 1, 1], [], []>} : vector<128x2xbf16>, vector<2x4xbf16>, vector<128x4xf32> -> vector<128x4xf32>
    %c0_54 = arith.constant 0 : index
    %c0_55 = arith.constant 0 : index
    %80 = vector.load %arg9[%c0_54, %c0_55] : memref<1x4xf32, #tpu.memory_space<vmem>>, vector<1x4xf32>
    %81 = vector.broadcast %80 : vector<1x4xf32> to vector<128x4xf32>
    %82 = arith.addf %79, %81 : vector<128x4xf32>
    %c0_56 = arith.constant 0 : index
    %c0_57 = arith.constant 0 : index
    %83 = vector.load %arg13[%c0_56, %c0_57] : memref<128x4xf32, #tpu.memory_space<vmem>>, vector<128x4xf32>
    %84 = arith.addf %83, %82 : vector<128x4xf32>
    %cst_58 = arith.constant 0.000000e+00 : f32
    %cst_59 = arith.constant 6.000000e+00 : f32
    %85 = vector.broadcast %cst_58 : f32 to vector<128x4xf32>
    %86 = arith.maximumf %85, %84 : vector<128x4xf32>
    %87 = vector.broadcast %cst_59 : f32 to vector<128x4xf32>
    %88 = arith.minimumf %87, %86 : vector<128x4xf32>
    %89 = vector.shape_cast %88 : vector<128x4xf32> to vector<8x16x4xf32>
    %c0_60 = arith.constant 0 : index
    %c0_61 = arith.constant 0 : index
    %c0_62 = arith.constant 0 : index
    %c0_63 = arith.constant 0 : index
    %90 = vector.load %arg11[%c0_60, %c0_61, %c0_62, %c0_63] : memref<1x8x16x4xf32, #tpu.memory_space<vmem>>, vector<1x8x16x4xf32>
    %91 = vector.shape_cast %90 : vector<1x8x16x4xf32> to vector<8x16x4xf32>
    %92 = vector.shape_cast %89 : vector<8x16x4xf32> to vector<1x8x16x4xf32>
    tpu.vector_store %arg11[%c0_60, %c0_61, %c0_62, %c0_63], %92 {strides = array<i32>} : memref<1x8x16x4xf32, #tpu.memory_space<vmem>>, vector<1x8x16x4xf32>,
    return
  }
  func.func @transform_0(%arg0: i32, %arg1: i32) -> (i32, i32, i32, i32) {
    %c0_i32 = arith.constant 0 : i32
    %c0_i32_0 = arith.constant 0 : i32
    %c0_i32_1 = arith.constant 0 : i32
    return %arg0, %arg1, %c0_i32, %c0_i32_0 : i32, i32, i32, i32
  }
  func.func @transform_1(%arg0: i32, %arg1: i32) -> (i32, i32, i32, i32, i32) {
    %c0_i32 = arith.constant 0 : i32
    %c0_i32_0 = arith.constant 0 : i32
    %c0_i32_1 = arith.constant 0 : i32
    %c0_i32_2 = arith.constant 0 : i32
    return %arg0, %arg1, %c0_i32, %c0_i32_0, %c0_i32_1 : i32, i32, i32, i32, i32
  }
  func.func @transform_2(%arg0: i32, %arg1: i32) -> (i32, i32) {
    %c0_i32 = arith.constant 0 : i32
    %c0_i32_0 = arith.constant 0 : i32
    %c0_i32_1 = arith.constant 0 : i32
    return %c0_i32, %c0_i32_0 : i32, i32
  }
  func.func @transform_3(%arg0: i32, %arg1: i32) -> (i32, i32) {
    %c0_i32 = arith.constant 0 : i32
    %c0_i32_0 = arith.constant 0 : i32
    %c0_i32_1 = arith.constant 0 : i32
    return %c0_i32, %c0_i32_0 : i32, i32
  }
  func.func @transform_4(%arg0: i32, %arg1: i32) -> (i32, i32, i32) {
    %c0_i32 = arith.constant 0 : i32
    %c0_i32_0 = arith.constant 0 : i32
    %c0_i32_1 = arith.constant 0 : i32
    %c0_i32_2 = arith.constant 0 : i32
    return %c0_i32, %c0_i32_0, %c0_i32_1 : i32, i32, i32
  }
  func.func @transform_5(%arg0: i32, %arg1: i32) -> (i32, i32) {
    %c0_i32 = arith.constant 0 : i32
    %c0_i32_0 = arith.constant 0 : i32
    %c0_i32_1 = arith.constant 0 : i32
    return %c0_i32, %c0_i32_0 : i32, i32
  }
  func.func @transform_6(%arg0: i32, %arg1: i32) -> (i32, i32) {
    %c0_i32 = arith.constant 0 : i32
    %c0_i32_0 = arith.constant 0 : i32
    %c0_i32_1 = arith.constant 0 : i32
    return %c0_i32, %c0_i32_0 : i32, i32
  }
  func.func @transform_7(%arg0: i32, %arg1: i32) -> (i32, i32) {
    %c0_i32 = arith.constant 0 : i32
    %c0_i32_0 = arith.constant 0 : i32
    %c0_i32_1 = arith.constant 0 : i32
    return %c0_i32, %c0_i32_0 : i32, i32
  }
  func.func @transform_8(%arg0: i32, %arg1: i32) -> (i32, i32) {
    %c0_i32 = arith.constant 0 : i32
    %c0_i32_0 = arith.constant 0 : i32
    %c0_i32_1 = arith.constant 0 : i32
    return %c0_i32, %c0_i32_0 : i32, i32
  }
  func.func @transform_9(%arg0: i32, %arg1: i32) -> (i32, i32, i32, i32) {
    %c0_i32 = arith.constant 0 : i32
    %c0_i32_0 = arith.constant 0 : i32
    %c0_i32_1 = arith.constant 0 : i32
    return %arg0, %arg1, %c0_i32, %c0_i32_0 : i32, i32, i32, i32
  }
}

</mosaic_0001>

<llo_original>
// kernel: _lambda_.1
$region0: #{_lambda_.1}
  #allocation0 [shape = 'u32[]', space=smem, size = 0x4, offset = 0x4, fixed_abs, tag = 'smem constant byte address 0x4 - core index']
  #allocation1 [shape = 'u32[144,128]{1,0:T(1,128)}', space=vmem, size = 0x12000, scoped, tag = 'internal scratch']
  #allocation2 [shape = 'f32[128,2]{1,0:T(8,128)}', space=vmem, size = 0x10000, scoped, tag = 'scratch operand']
  #allocation3 [shape = 'f32[128,4]{1,0:T(8,128)}', space=vmem, size = 0x10000, scoped, tag = 'scratch operand']
  %s0 = inlined_call_operand.vmem [shape: f32[2,16,16,4], index: 0, kind: input, shape index: {}]
  %s1 = inlined_call_operand.vmem [shape: f32[2,2,2,16,4], index: 1, kind: input, shape index: {}]
  %s2 = inlined_call_operand.vmem [shape: bf16[4,2], index: 2, kind: input, shape index: {}]
  %s3 = inlined_call_operand.vmem [shape: f32[1,2], index: 3, kind: input, shape index: {}]
  %s4 = inlined_call_operand.vmem [shape: bf16[3,6,2], index: 4, kind: input, shape index: {}]
  %s5 = inlined_call_operand.vmem [shape: f32[1,2], index: 5, kind: input, shape index: {}]
  %s6 = inlined_call_operand.vmem [shape: bf16[2,4], index: 6, kind: input, shape index: {}]
  %s7 = inlined_call_operand.vmem [shape: f32[1,4], index: 7, kind: input, shape index: {}]
  %s8 = inlined_call_operand.vmem [shape: bf16[4,4], index: 8, kind: input, shape index: {}]
  %s9 = inlined_call_operand.vmem [shape: f32[2,16,16,4], index: 9, kind: output, shape index: {}]
  %s10 = sld [smem:[#allocation0]]
  $region69: #{_lambda_.1} parent=0
    _
  %s12 = ssub.s32 1, %s10
  %s13 = scalar_select 0, %s12, %s10
  loop: start=0, step=1, limit=6
  $region2: #{_lambda_.1} parent=0 // loop_pre_header
    _
  $region3: #{_lambda_.1} parent=0 // loop_header
    %s15 = sphi 0, %s19
    %p16 = scmp.ge.s32.totalorder %s15, 6
    %s22 = sphi 0, %s34
    %s23 = sphi 0, %s30
    %s24 = sphi 0, %s22
    %s25 = sphi 0, %s23
    %s26 = sphi 0, %s24
    %s27 = sphi 0, %s25
    %s39 = sphi 0, %s41
    %s42 = sphi 0, %s39
    %s43 = sphi 0, %s42
    %s59 = sphi 0, %s43
    %s67 = sphi 0, %s69
    %s70 = sphi 0, %s67
    %s71 = sphi 0, %s70
    %s87 = sphi 0, %s71
    %s91 = sphi 0, %s91
    %s93 = sphi 0, %s91
    %s94 = sphi 0, %s93
    %s108 = sphi 0, %s94
    %s112 = sphi 0, %s112
    %s114 = sphi 0, %s112
    %s115 = sphi 0, %s114
    %s129 = sphi 0, %s115
    %s133 = sphi 0, %s133
    %s135 = sphi 0, %s133
    %s136 = sphi 0, %s135
    %s150 = sphi 0, %s136
    %s154 = sphi 0, %s154
    %s156 = sphi 0, %s154
    %s157 = sphi 0, %s156
    %s171 = sphi 0, %s157
    %s175 = sphi 0, %s175
    %s177 = sphi 0, %s175
    %s178 = sphi 0, %s177
    %s192 = sphi 0, %s178
    %s196 = sphi 0, %s196
    %s198 = sphi 0, %s196
    %s199 = sphi 0, %s198
    %s213 = sphi 0, %s199
    %s217 = sphi 0, %s217
    %s219 = sphi 0, %s217
    %s220 = sphi 0, %s219
    %s234 = sphi 0, %s220
    %s242 = sphi 0, %s244
    %s245 = sphi 0, %s242
    %s246 = sphi 0, %s245
    %s262 = sphi 0, %s246
  $region4: #{_lambda_.1} parent=0 // loop_header_branch
    %18 = sbr.rel (%p16) target = $region8
  $region5: #{_lambda_.1} parent=0 // loop_body
    %s20 = ssub.s32 %s15, 1
    %s21 = ssub.s32 %s15, 2
    %s28 = sadd.s32 1, %s23
    %p29 = scmp.ge.s32.totalorder %s28, 2
    %s30 = scalar_select %p29, 0, %s28
    %s31 = sadd.s32 1, %s22
    %s32 = scalar_select %p29, %s31, %s22
    %p33 = scmp.ge.s32.totalorder %s32, 2
    %s34 = scalar_select %p33, 0, %s32
    %s35 = ssub.s32 %s22, %s34
    %s36 = ssub.s32 %s23, %s30
    %s37 = sor.u32 %s35, %s36
    %p38 = scmp.eq.s32.totalorder %s37, 0
    %s40 = sadd.s32 %s39, 1
    %s41 = scalar_select %p38, %s39, %s40
    %p44 = pneg %p38
    %p45 = scmp.eq.s32.totalorder %s15, 3
    %p46 = por %p44, %p45
    %p47 = scmp.ne.s32.totalorder %s39, %s42
    %p48 = scmp.eq.s32.totalorder %s15, 0
    %p49 = por %p47, %p48
    %p50 = scmp.ne.s32.totalorder %s39, %s42
    %p51 = scmp.eq.s32.totalorder %s20, 3
    %p52 = por %p50, %p51
    %p53 = scmp.ne.s32.totalorder %s42, %s43
    %p54 = scmp.eq.s32.totalorder %s20, 0
    %p55 = por %p53, %p54
    %p56 = scmp.ne.s32.totalorder %s42, %s43
    %p57 = scmp.eq.s32.totalorder %s21, 3
    %p58 = por %p56, %p57
    %p60 = scmp.ne.s32.totalorder %s43, %s59
    %p61 = scmp.eq.s32.totalorder %s21, 0
    %p62 = por %p60, %p61
    %s63 = ssub.s32 %s22, %s34
    %s64 = ssub.s32 %s23, %s30
    %s65 = sor.u32 %s63, %s64
    %p66 = scmp.eq.s32.totalorder %s65, 0
    %s68 = sadd.s32 %s67, 1
    %s69 = scalar_select %p66, %s67, %s68
    %p72 = pneg %p66
    %p73 = scmp.eq.s32.totalorder %s15, 3
    %p74 = por %p72, %p73
    %p75 = scmp.ne.s32.totalorder %s67, %s70
    %p76 = scmp.eq.s32.totalorder %s15, 0
    %p77 = por %p75, %p76
    %p78 = scmp.ne.s32.totalorder %s67, %s70
    %p79 = scmp.eq.s32.totalorder %s20, 3
    %p80 = por %p78, %p79
    %p81 = scmp.ne.s32.totalorder %s70, %s71
    %p82 = scmp.eq.s32.totalorder %s20, 0
    %p83 = por %p81, %p82
    %p84 = scmp.ne.s32.totalorder %s70, %s71
    %p85 = scmp.eq.s32.totalorder %s21, 3
    %p86 = por %p84, %p85
    %p88 = scmp.ne.s32.totalorder %s71, %s87
    %p89 = scmp.eq.s32.totalorder %s21, 0
    %p90 = por %p88, %p89
    %s92 = sadd.s32 %s91, 1
    %p95 = scmp.eq.s32.totalorder %s15, 3
    %p96 = scmp.ne.s32.totalorder %s91, %s93
    %p97 = scmp.eq.s32.totalorder %s15, 0
    %p98 = por %p96, %p97
    %p99 = scmp.ne.s32.totalorder %s91, %s93
    %p100 = scmp.eq.s32.totalorder %s20, 3
    %p101 = por %p99, %p100
    %p102 = scmp.ne.s32.totalorder %s93, %s94
    %p103 = scmp.eq.s32.totalorder %s20, 0
    %p104 = por %p102, %p103
    %p105 = scmp.ne.s32.totalorder %s93, %s94
    %p106 = scmp.eq.s32.totalorder %s21, 3
    %p107 = por %p105, %p106
    %p109 = scmp.ne.s32.totalorder %s94, %s108
    %p110 = scmp.eq.s32.totalorder %s21, 0
    %p111 = por %p109, %p110
    %s113 = sadd.s32 %s112, 1
    %p116 = scmp.eq.s32.totalorder %s15, 3
    %p117 = scmp.ne.s32.totalorder %s112, %s114
    %p118 = scmp.eq.s32.totalorder %s15, 0
    %p119 = por %p117, %p118
    %p120 = scmp.ne.s32.totalorder %s112, %s114
    %p121 = scmp.eq.s32.totalorder %s20, 3
    %p122 = por %p120, %p121
    %p123 = scmp.ne.s32.totalorder %s114, %s115
    %p124 = scmp.eq.s32.totalorder %s20, 0
    %p125 = por %p123, %p124
    %p126 = scmp.ne.s32.totalorder %s114, %s115
    %p127 = scmp.eq.s32.totalorder %s21, 3
    %p128 = por %p126, %p127
    %p130 = scmp.ne.s32.totalorder %s115, %s129
    %p131 = scmp.eq.s32.totalorder %s21, 0
    %p132 = por %p130, %p131
    %s134 = sadd.s32 %s133, 1
    %p137 = scmp.eq.s32.totalorder %s15, 3
    %p138 = scmp.ne.s32.totalorder %s133, %s135
    %p139 = scmp.eq.s32.totalorder %s15, 0
    %p140 = por %p138, %p139
    %p141 = scmp.ne.s32.totalorder %s133, %s135
    %p142 = scmp.eq.s32.totalorder %s20, 3
    %p143 = por %p141, %p142
    %p144 = scmp.ne.s32.totalorder %s135, %s136
    %p145 = scmp.eq.s32.totalorder %s20, 0
    %p146 = por %p144, %p145
    %p147 = scmp.ne.s32.totalorder %s135, %s136
    %p148 = scmp.eq.s32.totalorder %s21, 3
    %p149 = por %p147, %p148
    %p151 = scmp.ne.s32.totalorder %s136, %s150
    %p152 = scmp.eq.s32.totalorder %s21, 0
    %p153 = por %p151, %p152
    %s155 = sadd.s32 %s154, 1
    %p158 = scmp.eq.s32.totalorder %s15, 3
    %p159 = scmp.ne.s32.totalorder %s154, %s156
    %p160 = scmp.eq.s32.totalorder %s15, 0
    %p161 = por %p159, %p160
    %p162 = scmp.ne.s32.totalorder %s154, %s156
    %p163 = scmp.eq.s32.totalorder %s20, 3
    %p164 = por %p162, %p163
    %p165 = scmp.ne.s32.totalorder %s156, %s157
    %p166 = scmp.eq.s32.totalorder %s20, 0
    %p167 = por %p165, %p166
    %p168 = scmp.ne.s32.totalorder %s156, %s157
    %p169 = scmp.eq.s32.totalorder %s21, 3
    %p170 = por %p168, %p169
    %p172 = scmp.ne.s32.totalorder %s157, %s171
    %p173 = scmp.eq.s32.totalorder %s21, 0
    %p174 = por %p172, %p173
    %s176 = sadd.s32 %s175, 1
    %p179 = scmp.eq.s32.totalorder %s15, 3
    %p180 = scmp.ne.s32.totalorder %s175, %s177
    %p181 = scmp.eq.s32.totalorder %s15, 0
    %p182 = por %p180, %p181
    %p183 = scmp.ne.s32.totalorder %s175, %s177
    %p184 = scmp.eq.s32.totalorder %s20, 3
    %p185 = por %p183, %p184
    %p186 = scmp.ne.s32.totalorder %s177, %s178
    %p187 = scmp.eq.s32.totalorder %s20, 0
    %p188 = por %p186, %p187
    %p189 = scmp.ne.s32.totalorder %s177, %s178
    %p190 = scmp.eq.s32.totalorder %s21, 3
    %p191 = por %p189, %p190
    %p193 = scmp.ne.s32.totalorder %s178, %s192
    %p194 = scmp.eq.s32.totalorder %s21, 0
    %p195 = por %p193, %p194
    %s197 = sadd.s32 %s196, 1
    %p200 = scmp.eq.s32.totalorder %s15, 3
    %p201 = scmp.ne.s32.totalorder %s196, %s198
    %p202 = scmp.eq.s32.totalorder %s15, 0
    %p203 = por %p201, %p202
    %p204 = scmp.ne.s32.totalorder %s196, %s198
    %p205 = scmp.eq.s32.totalorder %s20, 3
    %p206 = por %p204, %p205
    %p207 = scmp.ne.s32.totalorder %s198, %s199
    %p208 = scmp.eq.s32.totalorder %s20, 0
    %p209 = por %p207, %p208
    %p210 = scmp.ne.s32.totalorder %s198, %s199
    %p211 = scmp.eq.s32.totalorder %s21, 3
    %p212 = por %p210, %p211
    %p214 = scmp.ne.s32.totalorder %s199, %s213
    %p215 = scmp.eq.s32.totalorder %s21, 0
    %p216 = por %p214, %p215
    %s218 = sadd.s32 %s217, 1
    %p221 = scmp.eq.s32.totalorder %s15, 3
    %p222 = scmp.ne.s32.totalorder %s217, %s219
    %p223 = scmp.eq.s32.totalorder %s15, 0
    %p224 = por %p222, %p223
    %p225 = scmp.ne.s32.totalorder %s217, %s219
    %p226 = scmp.eq.s32.totalorder %s20, 3
    %p227 = por %p225, %p226
    %p228 = scmp.ne.s32.totalorder %s219, %s220
    %p229 = scmp.eq.s32.totalorder %s20, 0
    %p230 = por %p228, %p229
    %p231 = scmp.ne.s32.totalorder %s219, %s220
    %p232 = scmp.eq.s32.totalorder %s21, 3
    %p233 = por %p231, %p232
    %p235 = scmp.ne.s32.totalorder %s220, %s234
    %p236 = scmp.eq.s32.totalorder %s21, 0
    %p237 = por %p235, %p236
    %s238 = ssub.s32 %s22, %s34
    %s239 = ssub.s32 %s23, %s30
    %s240 = sor.u32 %s238, %s239
    %p241 = scmp.eq.s32.totalorder %s240, 0
    %s243 = sadd.s32 %s242, 1
    %s244 = scalar_select %p241, %s242, %s243
    %p247 = pneg %p241
    %p248 = scmp.eq.s32.totalorder %s15, 3
    %p249 = por %p247, %p248
    %p250 = scmp.ne.s32.totalorder %s242, %s245
    %p251 = scmp.eq.s32.totalorder %s15, 0
    %p252 = por %p250, %p251
    %p253 = scmp.ne.s32.totalorder %s242, %s245
    %p254 = scmp.eq.s32.totalorder %s20, 3
    %p255 = por %p253, %p254
    %p256 = scmp.ne.s32.totalorder %s245, %s246
    %p257 = scmp.eq.s32.totalorder %s20, 0
    %p258 = por %p256, %p257
    %p259 = scmp.ne.s32.totalorder %s245, %s246
    %p260 = scmp.eq.s32.totalorder %s21, 3
    %p261 = por %p259, %p260
    %p263 = scmp.ne.s32.totalorder %s246, %s262
    %p264 = scmp.eq.s32.totalorder %s21, 0
    %p265 = por %p263, %p264
    %p266 = scmp.le.s32.totalorder 1, %s15
    %p267 = scmp.lt.s32.totalorder %s15, 5
    %p268 = pnand %p266, %p267
    %p269 = pneg %p268
    // Predicated region
    $region9: #{_lambda_.1} parent=5 // pred_check
      _
    $region10: #{_lambda_.1} parent=5 // pred_check_branch
      %271 = sbr.rel (%p268) target = $region12
    $region11: #{_lambda_.1} parent=5 // pred_region
      %s272 = ssub.s32 %s15, 1
      // Predicated region
      $region13: #{_lambda_.1} parent=11 // pred_check
        %p273 = pneg %p104
      $region14: #{_lambda_.1} parent=11 // pred_check_branch
        %275 = sbr.rel (%p273) target = $region16
      $region15: #{_lambda_.1} parent=11 // pred_region
        _
      $region16: #{_lambda_.1} parent=11 // pred_fallthru
        _
      // Predicated region
      $region17: #{_lambda_.1} parent=11 // pred_check
        %p276 = pneg %p125
      $region18: #{_lambda_.1} parent=11 // pred_check_branch
        %278 = sbr.rel (%p276) target = $region20
      $region19: #{_lambda_.1} parent=11 // pred_region
        _
      $region20: #{_lambda_.1} parent=11 // pred_fallthru
        _
      // Predicated region
      $region21: #{_lambda_.1} parent=11 // pred_check
        %p279 = pneg %p146
      $region22: #{_lambda_.1} parent=11 // pred_check_branch
        %281 = sbr.rel (%p279) target = $region24
      $region23: #{_lambda_.1} parent=11 // pred_region
        _
      $region24: #{_lambda_.1} parent=11 // pred_fallthru
        _
      // Predicated region
      $region25: #{_lambda_.1} parent=11 // pred_check
        %p282 = pneg %p167
      $region26: #{_lambda_.1} parent=11 // pred_check_branch
        %284 = sbr.rel (%p282) target = $region28
      $region27: #{_lambda_.1} parent=11 // pred_region
        _
      $region28: #{_lambda_.1} parent=11 // pred_fallthru
        _
      // Predicated region
      $region29: #{_lambda_.1} parent=11 // pred_check
        %p285 = pneg %p188
      $region30: #{_lambda_.1} parent=11 // pred_check_branch
        %287 = sbr.rel (%p285) target = $region32
      $region31: #{_lambda_.1} parent=11 // pred_region
        _
      $region32: #{_lambda_.1} parent=11 // pred_fallthru
        _
      // Predicated region
      $region33: #{_lambda_.1} parent=11 // pred_check
        %p288 = pneg %p209
      $region34: #{_lambda_.1} parent=11 // pred_check_branch
        %290 = sbr.rel (%p288) target = $region36
      $region35: #{_lambda_.1} parent=11 // pred_region
        _
      $region36: #{_lambda_.1} parent=11 // pred_fallthru
        _
      // Predicated region
      $region37: #{_lambda_.1} parent=11 // pred_check
        %p291 = pneg %p230
      $region38: #{_lambda_.1} parent=11 // pred_check_branch
        %293 = sbr.rel (%p291) target = $region40
      $region39: #{_lambda_.1} parent=11 // pred_region
        _
      $region40: #{_lambda_.1} parent=11 // pred_fallthru
        _
    $region12: #{_lambda_.1} parent=5 // pred_fallthru
      _
    %p294 = scmp.lt.s32.totalorder %s15, 4
    // Predicated region
    $region41: #{_lambda_.1} parent=5 // pred_check
      %p295 = pneg %p294
    $region42: #{_lambda_.1} parent=5 // pred_check_branch
      %297 = sbr.rel (%p295) target = $region44
    $region43: #{_lambda_.1} parent=5 // pred_region
      // Predicated region
      $region45: #{_lambda_.1} parent=43 // pred_check
        %p298 = pneg %p49
      $region46: #{_lambda_.1} parent=43 // pred_check_branch
        %300 = sbr.rel (%p298) target = $region48
      $region47: #{_lambda_.1} parent=43 // pred_region
        %s301 = smul.u32 8, %s23
        %p302 = scmp.lt.s32.totalorder %s22, 1
        %s303 = scalar_select %p302, %s22, 1
        %p304 = scmp.lt.s32.totalorder %s301, 15
        %s305 = scalar_select %p304, %s301, 15
        %s306 = smul.addr %s305, 2
        %s307 = smul.addr %s303, 32
        %s308 = sadd.s32 %s306, %s307
        %s309 = smul.addr %s308, 8
        %s310 = scalar_lea.vmem %s0, %s309
        %s311 = smul.u32 8, %s23
      $region48: #{_lambda_.1} parent=43 // pred_fallthru
        _
      // Predicated region
      $region49: #{_lambda_.1} parent=43 // pred_check
        %p312 = pneg %p77
      $region50: #{_lambda_.1} parent=43 // pred_check_branch
        %314 = sbr.rel (%p312) target = $region52
      $region51: #{_lambda_.1} parent=43 // pred_region
        %p315 = scmp.lt.s32.totalorder %s22, 1
        %s316 = scalar_select %p315, %s22, 1
        %p317 = scmp.lt.s32.totalorder %s23, 1
        %s318 = scalar_select %p317, %s23, 1
        %s319 = smul.addr %s318, 4
        %s320 = smul.addr %s316, 8
        %s321 = sadd.s32 %s319, %s320
        %s322 = smul.addr %s321, 8
        %s323 = scalar_lea.vmem %s1, %s322
      $region52: #{_lambda_.1} parent=43 // pred_fallthru
        _
    $region44: #{_lambda_.1} parent=5 // pred_fallthru
      _
    %p324 = scmp.le.s32.totalorder 1, %s15
    %p325 = scmp.lt.s32.totalorder %s15, 5
    %p326 = pnand %p324, %p325
    %p327 = pneg %p326
    // Predicated region
    $region53: #{_lambda_.1} parent=5 // pred_check
      _
    $region54: #{_lambda_.1} parent=5 // pred_check_branch
      %329 = sbr.rel (%p326) target = $region56
    $region55: #{_lambda_.1} parent=5 // pred_region
      %s330 = ssub.s32 %s15, 1
      %s331 = smul.u32 8, %s25
      %p332 = scmp.lt.s32.totalorder %s24, 1
      %s333 = scalar_select %p332, %s24, 1
      %p334 = scmp.lt.s32.totalorder %s331, 15
      %s335 = scalar_select %p334, %s331, 15
      %s336 = smul.addr %s335, 2
      %s337 = smul.addr %s333, 32
      %s338 = sadd.s32 %s336, %s337
      %s339 = smul.addr %s338, 8
      %s340 = scalar_lea.vmem %s0, %s339
      %p341 = pneg %p55
      %p342 = pneg %p52
      %p343 = scmp.lt.s32.totalorder %s24, 1
      %s344 = scalar_select %p343, %s24, 1
      %p345 = scmp.lt.s32.totalorder %s25, 1
      %s346 = scalar_select %p345, %s25, 1
      %s347 = smul.addr %s346, 4
      %s348 = smul.addr %s344, 8
      %s349 = sadd.s32 %s347, %s348
      %s350 = smul.addr %s349, 8
      %s351 = scalar_lea.vmem %s1, %s350
      %p352 = pneg %p83
      %p353 = pneg %p80
      %p354 = pneg %p104
      %p355 = pneg %p101
      %p356 = pneg %p125
      %p357 = pneg %p122
      %p358 = pneg %p146
      %p359 = pneg %p143
      %p360 = pneg %p167
      %p361 = pneg %p164
      %p362 = pneg %p188
      %p363 = pneg %p185
      %p364 = pneg %p209
      %p365 = pneg %p206
      %p366 = pneg %p230
      %p367 = pneg %p227
      %p368 = pneg %p258
      %p369 = pneg %p255
      %s370 = smul.u32 8, %s25
      %p371 = scmp.lt.s32.totalorder %s24, 1
      %s372 = scalar_select %p371, %s24, 1
      %p373 = scmp.lt.s32.totalorder %s370, 15
      %s374 = scalar_select %p373, %s370, 15
      %s375 = smul.addr %s374, 2
      %s376 = smul.addr %s372, 32
      %s377 = sadd.s32 %s375, %s376
      %s378 = smul.addr %s377, 8
      %s379 = scalar_lea.vmem %s9, %s378
      %s380 = smul.u32 8, %s25
      %p381 = scmp.lt.s32.totalorder %s24, 1
      %s382 = scalar_select %p381, %s24, 1
      %p383 = scmp.lt.s32.totalorder %s380, 15
      %s384 = scalar_select %p383, %s380, 15
      %s385 = smul.addr %s384, 2
      %s386 = smul.addr %s382, 32
      %s387 = sadd.s32 %s385, %s386
      %s388 = smul.addr %s387, 8
      %s389 = scalar_lea.vmem %s0, %s388
      %s390 = smul.u32 8, %s25
      %p391 = scmp.lt.s32.totalorder %s24, 1
      %s392 = scalar_select %p391, %s24, 1
      %p393 = scmp.lt.s32.totalorder %s25, 1
      %s394 = scalar_select %p393, %s25, 1
      %s395 = smul.addr %s394, 4
      %s396 = smul.addr %s392, 8
      %s397 = sadd.s32 %s395, %s396
      %s398 = smul.addr %s397, 8
      %s399 = scalar_lea.vmem %s1, %s398
      %s400 = smul.u32 8, %s25
      %p401 = scmp.lt.s32.totalorder %s24, 1
      %s402 = scalar_select %p401, %s24, 1
      %p403 = scmp.lt.s32.totalorder %s400, 15
      %s404 = scalar_select %p403, %s400, 15
      %s405 = smul.addr %s404, 2
      %s406 = smul.addr %s402, 32
      %s407 = sadd.s32 %s405, %s406
      %s408 = smul.addr %s407, 8
      %s409 = scalar_lea.vmem %s9, %s408
      %s410 = smul.u32 8, %s25
      %v412 = vld [vmem:[%s389] sm:$0xff]
      %v413 = vld [vmem:[%s389 + $0x8] sm:$0xff]
      %v414 = vld [vmem:[%s389 + $0x10] sm:$0xff]
      %v415 = vld [vmem:[%s389 + $0x18] sm:$0xff]
      %v416 = vld [vmem:[%s389 + $0x20] sm:$0xff]
      %v417 = vld [vmem:[%s389 + $0x28] sm:$0xff]
      %v418 = vld [vmem:[%s389 + $0x30] sm:$0xff]
      %v419 = vld [vmem:[%s389 + $0x38] sm:$0xff]
      %v420 = vld [vmem:[%s389 + $0x40] sm:$0xff]
      %v421 = vld [vmem:[%s389 + $0x48] sm:$0xff]
      %v422 = vld [vmem:[%s389 + $0x50] sm:$0xff]
      %v423 = vld [vmem:[%s389 + $0x58] sm:$0xff]
      %v424 = vld [vmem:[%s389 + $0x60] sm:$0xff]
      %v425 = vld [vmem:[%s389 + $0x68] sm:$0xff]
      %v426 = vld [vmem:[%s389 + $0x70] sm:$0xff]
      %v427 = vld [vmem:[%s389 + $0x78] sm:$0xff]
      %v428 = vpack.c.bf16 %v413, %v412
      %v429 = vpack.c.bf16 %v415, %v414
      %v430 = vpack.c.bf16 %v417, %v416
      %v431 = vpack.c.bf16 %v419, %v418
      %v432 = vpack.c.bf16 %v421, %v420
      %v433 = vpack.c.bf16 %v423, %v422
      %v434 = vpack.c.bf16 %v425, %v424
      %v435 = vpack.c.bf16 %v427, %v426
      %v436 = vld [vmem:[%s8] sm:$0x3]
      %vm437 = vcmask 31744
      %v439 = vsel %vm437, %v428, 0
      %v442 = vsel %vm437, %v429, 0
      %v445 = vsel %vm437, %v430, 0
      %v448 = vsel %vm437, %v431, 0
      %v451 = vsel %vm437, %v432, 0
      %v454 = vsel %vm437, %v433, 0
      %v457 = vsel %vm437, %v434, 0
      %v460 = vsel %vm437, %v435, 0
      %vm462 = vcmask 1041408
      %v464 = vsel %vm462, %v436, 0
      %466 = vmatprep.subr.bf16.mxu0 0
      %467 = vmatpush1.bf16.msra.mxu0 0
      %468 = vmatprep.subr.bf16.mxu0 0
      %469 = vmatpush1.bf16.msra.mxu0 0
      %470 = vmatprep.subr.bf16.mxu0 0
      %471 = vmatpush1.bf16.msra.mxu0 0
      %472 = vmatprep.subr.bf16.mxu0 0
      %473 = vmatpush1.bf16.msra.mxu0 0
      %474 = vmatprep.subr.bf16.mxu0 0
      %475 = vmatpush1.bf16.msra.mxu0 0
      %476 = vmatprep.subr.bf16.mxu0 0
      %477 = vmatpush1.bf16.msra.mxu0 0
      %478 = vmatprep.subr.bf16.mxu0 0
      %479 = vmatpush1.bf16.msra.mxu0 0
      %480 = vmatprep.subr.bf16.mxu0 0
      %481 = vmatpush1.bf16.msra.mxu0 %v464
      %482 = vmatprep.subr.bf16.mxu0 0
      %483 = vmatpush2.bf16.msra.mxu0 0
      %484 = vmatprep.subr.bf16.mxu0 0
      %485 = vmatpush2.bf16.msra.mxu0 0
      %486 = vmatprep.subr.bf16.mxu0 0
      %487 = vmatpush2.bf16.msra.mxu0 0
      %488 = vmatprep.subr.bf16.mxu0 0
      %489 = vmatpush2.bf16.msra.mxu0 0
      %490 = vmatprep.subr.bf16.mxu0 0
      %491 = vmatpush2.bf16.msra.mxu0 0
      %492 = vmatprep.subr.bf16.mxu0 0
      %493 = vmatpush2.bf16.msra.mxu0 0
      %494 = vmatprep.subr.bf16.mxu0 0
      %495 = vmatpush2.bf16.msra.mxu0 0
      %496 = vmatprep.subr.bf16.mxu0 0
      %497 = vmatpush2.bf16.msra.mxu0 0
      %498 = vmatprep.mubr.bf16.mxu0 0
      %499 = vmatmul.mubr.bf16.gmra.mxu0 %v439
      %v500 = vpop.f32.mrf.mxu0
      %v501 = vadd.f32 0.0, %v500
      %v502 = vpop.f32.mrf.mxu0
      %v503 = vpop.f32.mrf.mxu0
      %v504 = vadd.f32 0.0, %v503
      %v505 = vpop.f32.mrf.mxu0
      %506 = vmatprep.mubr.bf16.mxu0 0
      %507 = vmatmul.mubr.bf16.gmra.mxu0 %v442
      %v508 = vpop.f32.mrf.mxu0
      %v509 = vadd.f32 0.0, %v508
      %v510 = vpop.f32.mrf.mxu0
      %v511 = vpop.f32.mrf.mxu0
      %v512 = vadd.f32 0.0, %v511
      %v513 = vpop.f32.mrf.mxu0
      %514 = vmatprep.mubr.bf16.mxu0 0
      %515 = vmatmul.mubr.bf16.gmra.mxu0 %v445
      %v516 = vpop.f32.mrf.mxu0
      %v517 = vadd.f32 0.0, %v516
      %v518 = vpop.f32.mrf.mxu0
      %v519 = vpop.f32.mrf.mxu0
      %v520 = vadd.f32 0.0, %v519
      %v521 = vpop.f32.mrf.mxu0
      %522 = vmatprep.mubr.bf16.mxu0 0
      %523 = vmatmul.mubr.bf16.gmra.mxu0 %v448
      %v524 = vpop.f32.mrf.mxu0
      %v525 = vadd.f32 0.0, %v524
      %v526 = vpop.f32.mrf.mxu0
      %v527 = vpop.f32.mrf.mxu0
      %v528 = vadd.f32 0.0, %v527
      %v529 = vpop.f32.mrf.mxu0
      %530 = vmatprep.mubr.bf16.mxu0 0
      %531 = vmatmul.mubr.bf16.gmra.mxu0 %v451
      %v532 = vpop.f32.mrf.mxu0
      %v533 = vadd.f32 0.0, %v532
      %v534 = vpop.f32.mrf.mxu0
      %v535 = vpop.f32.mrf.mxu0
      %v536 = vadd.f32 0.0, %v535
      %v537 = vpop.f32.mrf.mxu0
      %538 = vmatprep.mubr.bf16.mxu0 0
      %539 = vmatmul.mubr.bf16.gmra.mxu0 %v454
      %v540 = vpop.f32.mrf.mxu0
      %v541 = vadd.f32 0.0, %v540
      %v542 = vpop.f32.mrf.mxu0
      %v543 = vpop.f32.mrf.mxu0
      %v544 = vadd.f32 0.0, %v543
      %v545 = vpop.f32.mrf.mxu0
      %546 = vmatprep.mubr.bf16.mxu0 0
      %547 = vmatmul.mubr.bf16.gmra.mxu0 %v457
      %v548 = vpop.f32.mrf.mxu0
      %v549 = vadd.f32 0.0, %v548
      %v550 = vpop.f32.mrf.mxu0
      %v551 = vpop.f32.mrf.mxu0
      %v552 = vadd.f32 0.0, %v551
      %v553 = vpop.f32.mrf.mxu0
      %554 = vmatprep.mubr.bf16.mxu0 0
      %555 = vmatmul.mubr.bf16.gmra.mxu0 %v460
      %v556 = vpop.f32.mrf.mxu0
      %v557 = vadd.f32 0.0, %v556
      %v558 = vpop.f32.mrf.mxu0
      %v559 = vpop.f32.mrf.mxu0
      %v560 = vadd.f32 0.0, %v559
      %v561 = vpop.f32.mrf.mxu0
      %562 = vdwg.mxu0
      %563 = vst.msk [vmem:[#allocation3] sm:$0xff] %vm437, %v501
      %564 = vst.msk [vmem:[#allocation3 + $0x8] sm:$0xff] %vm437, %v504
      %565 = vst.msk [vmem:[#allocation3 + $0x10] sm:$0xff] %vm437, %v509
      %566 = vst.msk [vmem:[#allocation3 + $0x18] sm:$0xff] %vm437, %v512
      %567 = vst.msk [vmem:[#allocation3 + $0x20] sm:$0xff] %vm437, %v517
      %568 = vst.msk [vmem:[#allocation3 + $0x28] sm:$0xff] %vm437, %v520
      %569 = vst.msk [vmem:[#allocation3 + $0x30] sm:$0xff] %vm437, %v525
      %570 = vst.msk [vmem:[#allocation3 + $0x38] sm:$0xff] %vm437, %v528
      %571 = vst.msk [vmem:[#allocation3 + $0x40] sm:$0xff] %vm437, %v533
      %572 = vst.msk [vmem:[#allocation3 + $0x48] sm:$0xff] %vm437, %v536
      %573 = vst.msk [vmem:[#allocation3 + $0x50] sm:$0xff] %vm437, %v541
      %574 = vst.msk [vmem:[#allocation3 + $0x58] sm:$0xff] %vm437, %v544
      %575 = vst.msk [vmem:[#allocation3 + $0x60] sm:$0xff] %vm437, %v549
      %576 = vst.msk [vmem:[#allocation3 + $0x68] sm:$0xff] %vm437, %v552
      %577 = vst.msk [vmem:[#allocation3 + $0x70] sm:$0xff] %vm437, %v557
      %578 = vst.msk [vmem:[#allocation3 + $0x78] sm:$0xff] %vm437, %v560
      %v579 = vld [vmem:[%s2] sm:$0x3]
      %v580 = vld [vmem:[%s3] sm:$0x1]
      %v582 = vlaneseq
      %v583 = vshrl.u32 %v582, 7
      %v584 = vsub.s32 0, %v583
      %v585 = vrot.slane %v580, %v584
      %v588 = vsel %vm462, %v579, 0
      %590 = vmatprep.subr.bf16.mxu0 0
      %591 = vmatpush1.bf16.msra.mxu0 0
      %592 = vmatprep.subr.bf16.mxu0 0
      %593 = vmatpush1.bf16.msra.mxu0 0
      %594 = vmatprep.subr.bf16.mxu0 0
      %595 = vmatpush1.bf16.msra.mxu0 0
      %596 = vmatprep.subr.bf16.mxu0 0
      %597 = vmatpush1.bf16.msra.mxu0 0
      %598 = vmatprep.subr.bf16.mxu0 0
      %599 = vmatpush1.bf16.msra.mxu0 0
      %600 = vmatprep.subr.bf16.mxu0 0
      %601 = vmatpush1.bf16.msra.mxu0 0
      %602 = vmatprep.subr.bf16.mxu0 0
      %603 = vmatpush1.bf16.msra.mxu0 0
      %604 = vmatprep.subr.bf16.mxu0 0
      %605 = vmatpush1.bf16.msra.mxu0 %v588
      %606 = vmatprep.subr.bf16.mxu0 0
      %607 = vmatpush2.bf16.msra.mxu0 0
      %608 = vmatprep.subr.bf16.mxu0 0
      %609 = vmatpush2.bf16.msra.mxu0 0
      %610 = vmatprep.subr.bf16.mxu0 0
      %611 = vmatpush2.bf16.msra.mxu0 0
      %612 = vmatprep.subr.bf16.mxu0 0
      %613 = vmatpush2.bf16.msra.mxu0 0
      %614 = vmatprep.subr.bf16.mxu0 0
      %615 = vmatpush2.bf16.msra.mxu0 0
      %616 = vmatprep.subr.bf16.mxu0 0
      %617 = vmatpush2.bf16.msra.mxu0 0
      %618 = vmatprep.subr.bf16.mxu0 0
      %619 = vmatpush2.bf16.msra.mxu0 0
      %620 = vmatprep.subr.bf16.mxu0 0
      %621 = vmatpush2.bf16.msra.mxu0 0
      %622 = vmatprep.mubr.bf16.mxu0 0
      %623 = vmatmul.mubr.bf16.gmra.mxu0 %v439
      %v624 = vpop.f32.mrf.mxu0
      %v625 = vadd.f32 %v585, %v624
      %v626 = vpop.f32.mrf.mxu0
      %v627 = vpop.f32.mrf.mxu0
      %v628 = vadd.f32 %v585, %v627
      %v629 = vpop.f32.mrf.mxu0
      %630 = vmatprep.mubr.bf16.mxu0 0
      %631 = vmatmul.mubr.bf16.gmra.mxu0 %v442
      %v632 = vpop.f32.mrf.mxu0
      %v633 = vadd.f32 %v585, %v632
      %v634 = vpop.f32.mrf.mxu0
      %v635 = vpop.f32.mrf.mxu0
      %v636 = vadd.f32 %v585, %v635
      %v637 = vpop.f32.mrf.mxu0
      %638 = vmatprep.mubr.bf16.mxu0 0
      %639 = vmatmul.mubr.bf16.gmra.mxu0 %v445
      %v640 = vpop.f32.mrf.mxu0
      %v641 = vadd.f32 %v585, %v640
      %v642 = vpop.f32.mrf.mxu0
      %v643 = vpop.f32.mrf.mxu0
      %v644 = vadd.f32 %v585, %v643
      %v645 = vpop.f32.mrf.mxu0
      %646 = vmatprep.mubr.bf16.mxu0 0
      %647 = vmatmul.mubr.bf16.gmra.mxu0 %v448
      %v648 = vpop.f32.mrf.mxu0
      %v649 = vadd.f32 %v585, %v648
      %v650 = vpop.f32.mrf.mxu0
      %v651 = vpop.f32.mrf.mxu0
      %v652 = vadd.f32 %v585, %v651
      %v653 = vpop.f32.mrf.mxu0
      %654 = vmatprep.mubr.bf16.mxu0 0
      %655 = vmatmul.mubr.bf16.gmra.mxu0 %v451
      %v656 = vpop.f32.mrf.mxu0
      %v657 = vadd.f32 %v585, %v656
      %v658 = vpop.f32.mrf.mxu0
      %v659 = vpop.f32.mrf.mxu0
      %v660 = vadd.f32 %v585, %v659
      %v661 = vpop.f32.mrf.mxu0
      %662 = vmatprep.mubr.bf16.mxu0 0
      %663 = vmatmul.mubr.bf16.gmra.mxu0 %v454
      %v664 = vpop.f32.mrf.mxu0
      %v665 = vadd.f32 %v585, %v664
      %v666 = vpop.f32.mrf.mxu0
      %v667 = vpop.f32.mrf.mxu0
      %v668 = vadd.f32 %v585, %v667
      %v669 = vpop.f32.mrf.mxu0
      %670 = vmatprep.mubr.bf16.mxu0 0
      %671 = vmatmul.mubr.bf16.gmra.mxu0 %v457
      %v672 = vpop.f32.mrf.mxu0
      %v673 = vadd.f32 %v585, %v672
      %v674 = vpop.f32.mrf.mxu0
      %v675 = vpop.f32.mrf.mxu0
      %v676 = vadd.f32 %v585, %v675
      %v677 = vpop.f32.mrf.mxu0
      %678 = vmatprep.mubr.bf16.mxu0 0
      %679 = vmatmul.mubr.bf16.gmra.mxu0 %v460
      %v680 = vpop.f32.mrf.mxu0
      %v681 = vadd.f32 %v585, %v680
      %v682 = vpop.f32.mrf.mxu0
      %v683 = vpop.f32.mrf.mxu0
      %v684 = vadd.f32 %v585, %v683
      %v685 = vpop.f32.mrf.mxu0
      %686 = vdwg.mxu0
      %v687 = vmax.f32 %v625, 0.0
      %v688 = vmax.f32 %v628, 0.0
      %v689 = vmax.f32 %v633, 0.0
      %v690 = vmax.f32 %v636, 0.0
      %v691 = vmax.f32 %v641, 0.0
      %v692 = vmax.f32 %v644, 0.0
      %v693 = vmax.f32 %v649, 0.0
      %v694 = vmax.f32 %v652, 0.0
      %v695 = vmax.f32 %v657, 0.0
      %v696 = vmax.f32 %v660, 0.0
      %v697 = vmax.f32 %v665, 0.0
      %v698 = vmax.f32 %v668, 0.0
      %v699 = vmax.f32 %v673, 0.0
      %v700 = vmax.f32 %v676, 0.0
      %v701 = vmax.f32 %v681, 0.0
      %v702 = vmax.f32 %v684, 0.0
      %v703 = vmin.f32 %v687, 6.0
      %v704 = vmin.f32 %v688, 6.0
      %v705 = vmin.f32 %v689, 6.0
      %v706 = vmin.f32 %v690, 6.0
      %v707 = vmin.f32 %v691, 6.0
      %v708 = vmin.f32 %v692, 6.0
      %v709 = vmin.f32 %v693, 6.0
      %v710 = vmin.f32 %v694, 6.0
      %v711 = vmin.f32 %v695, 6.0
      %v712 = vmin.f32 %v696, 6.0
      %v713 = vmin.f32 %v697, 6.0
      %v714 = vmin.f32 %v698, 6.0
      %v715 = vmin.f32 %v699, 6.0
      %v716 = vmin.f32 %v700, 6.0
      %v717 = vmin.f32 %v701, 6.0
      %v718 = vmin.f32 %v702, 6.0
      %v719 = vld [vmem:[%s399] sm:$0xff]
      %v720 = vld [vmem:[%s399 + $0x8] sm:$0xff]
      %v721 = vld [vmem:[%s399 + $0x10] sm:$0xff]
      %v722 = vld [vmem:[%s399 + $0x18] sm:$0xff]
      %v723 = vpack.c.bf16 %v720, %v719
      %v724 = vpack.c.bf16 %v722, %v721
      %v726 = vsel %vm437, %v723, 0
      %v729 = vsel %vm437, %v724, 0
      %731 = vmatprep.subr.bf16.mxu0 0
      %732 = vmatpush1.bf16.msra.mxu0 0
      %733 = vmatprep.subr.bf16.mxu0 0
      %734 = vmatpush1.bf16.msra.mxu0 0
      %735 = vmatprep.subr.bf16.mxu0 0
      %736 = vmatpush1.bf16.msra.mxu0 0
      %737 = vmatprep.subr.bf16.mxu0 0
      %738 = vmatpush1.bf16.msra.mxu0 0
      %739 = vmatprep.subr.bf16.mxu0 0
      %740 = vmatpush1.bf16.msra.mxu0 0
      %741 = vmatprep.subr.bf16.mxu0 0
      %742 = vmatpush1.bf16.msra.mxu0 0
      %743 = vmatprep.subr.bf16.mxu0 0
      %744 = vmatpush1.bf16.msra.mxu0 0
      %745 = vmatprep.subr.bf16.mxu0 0
      %746 = vmatpush1.bf16.msra.mxu0 %v588
      %747 = vmatprep.subr.bf16.mxu0 0
      %748 = vmatpush2.bf16.msra.mxu0 0
      %749 = vmatprep.subr.bf16.mxu0 0
      %750 = vmatpush2.bf16.msra.mxu0 0
      %751 = vmatprep.subr.bf16.mxu0 0
      %752 = vmatpush2.bf16.msra.mxu0 0
      %753 = vmatprep.subr.bf16.mxu0 0
      %754 = vmatpush2.bf16.msra.mxu0 0
      %755 = vmatprep.subr.bf16.mxu0 0
      %756 = vmatpush2.bf16.msra.mxu0 0
      %757 = vmatprep.subr.bf16.mxu0 0
      %758 = vmatpush2.bf16.msra.mxu0 0
      %759 = vmatprep.subr.bf16.mxu0 0
      %760 = vmatpush2.bf16.msra.mxu0 0
      %761 = vmatprep.subr.bf16.mxu0 0
      %762 = vmatpush2.bf16.msra.mxu0 0
      %763 = vmatprep.mubr.bf16.mxu0 0
      %764 = vmatmul.mubr.bf16.gmra.mxu0 %v726
      %v765 = vpop.f32.mrf.mxu0
      %v766 = vadd.f32 %v585, %v765
      %v767 = vpop.f32.mrf.mxu0
      %v768 = vpop.f32.mrf.mxu0
      %v769 = vadd.f32 %v585, %v768
      %v770 = vpop.f32.mrf.mxu0
      %771 = vmatprep.mubr.bf16.mxu0 0
      %772 = vmatmul.mubr.bf16.gmra.mxu0 %v729
      %v773 = vpop.f32.mrf.mxu0
      %v774 = vadd.f32 %v585, %v773
      %v775 = vpop.f32.mrf.mxu0
      %v776 = vpop.f32.mrf.mxu0
      %v777 = vadd.f32 %v585, %v776
      %v778 = vpop.f32.mrf.mxu0
      %779 = vdwg.mxu0
      %v780 = vmax.f32 %v766, 0.0
      %v781 = vmax.f32 %v769, 0.0
      %v782 = vmax.f32 %v774, 0.0
      %v783 = vmax.f32 %v777, 0.0
      %v784 = vmin.f32 %v780, 6.0
      %v785 = vmin.f32 %v781, 6.0
      %v786 = vmin.f32 %v782, 6.0
      %v787 = vmin.f32 %v783, 6.0
      %p788 = scmp.gt.s32.totalorder %s25, 0
      %s789 = scalar_select %p788, 1, 0
      %s790 = scvt.s32.f32 %s789
      %v791 = vstv %s790
      %v792 = vmul.f32 %v784, %v791
      %v793 = vmul.f32 %v785, %v791
      %p794 = scmp.lt.s32.totalorder %s25, 1
      %s795 = scalar_select %p794, 1, 0
      %s796 = scvt.s32.f32 %s795
      %v797 = vstv %s796
      %v798 = vmul.f32 %v786, %v797
      %v799 = vmul.f32 %v787, %v797
      %vm820 = vcmask 1040384
      %v821 = vrot.slane %v792, 7
      %v822 = vrot.slane %v793, 7
      %v823 = vsel %vm820, %v821, %v822
      %v824 = vrot.slane %v703, 7
      %v825 = vrot.slane %v704, 7
      %v826 = vsel %vm820, %v824, %v825
      %v827 = vrot.slane %v705, 7
      %v828 = vrot.slane %v706, 7
      %v829 = vsel %vm820, %v827, %v828
      %v830 = vrot.slane %v707, 7
      %v831 = vrot.slane %v708, 7
      %v832 = vsel %vm820, %v830, %v831
      %v833 = vrot.slane %v709, 7
      %v834 = vrot.slane %v710, 7
      %v835 = vsel %vm820, %v833, %v834
      %v836 = vrot.slane %v711, 7
      %v837 = vrot.slane %v712, 7
      %v838 = vsel %vm820, %v836, %v837
      %v839 = vrot.slane %v713, 7
      %v840 = vrot.slane %v714, 7
      %v841 = vsel %vm820, %v839, %v840
      %v842 = vrot.slane %v715, 7
      %v843 = vrot.slane %v716, 7
      %v844 = vsel %vm820, %v842, %v843
      %v845 = vrot.slane %v717, 7
      %v846 = vrot.slane %v718, 7
      %v847 = vsel %vm820, %v845, %v846
      %v848 = vrot.slane %v798, 7
      %v849 = vrot.slane %v799, 7
      %v850 = vsel %vm820, %v848, %v849
      %v871 = vsel %vm820, 0.0, %v821
      %v872 = vsel %vm820, 0.0, %v824
      %v873 = vsel %vm820, 0.0, %v827
      %v874 = vsel %vm820, 0.0, %v830
      %v875 = vsel %vm820, 0.0, %v833
      %v876 = vsel %vm820, 0.0, %v836
      %v877 = vsel %vm820, 0.0, %v839
      %v878 = vsel %vm820, 0.0, %v842
      %v879 = vsel %vm820, 0.0, %v845
      %v880 = vsel %vm820, 0.0, %v848
      %vm881 = vcmask 1046528
      %v882 = vrot.slane %v792, 1
      %v883 = vrot.slane %v793, 1
      %v884 = vsel %vm881, %v882, %v883
      %v885 = vrot.slane %v703, 1
      %v886 = vrot.slane %v704, 1
      %v887 = vsel %vm881, %v885, %v886
      %v888 = vrot.slane %v705, 1
      %v889 = vrot.slane %v706, 1
      %v890 = vsel %vm881, %v888, %v889
      %v891 = vrot.slane %v707, 1
      %v892 = vrot.slane %v708, 1
      %v893 = vsel %vm881, %v891, %v892
      %v894 = vrot.slane %v709, 1
      %v895 = vrot.slane %v710, 1
      %v896 = vsel %vm881, %v894, %v895
      %v897 = vrot.slane %v711, 1
      %v898 = vrot.slane %v712, 1
      %v899 = vsel %vm881, %v897, %v898
      %v900 = vrot.slane %v713, 1
      %v901 = vrot.slane %v714, 1
      %v902 = vsel %vm881, %v900, %v901
      %v903 = vrot.slane %v715, 1
      %v904 = vrot.slane %v716, 1
      %v905 = vsel %vm881, %v903, %v904
      %v906 = vrot.slane %v717, 1
      %v907 = vrot.slane %v718, 1
      %v908 = vsel %vm881, %v906, %v907
      %v909 = vrot.slane %v798, 1
      %v910 = vrot.slane %v799, 1
      %v911 = vsel %vm881, %v909, %v910
      %v922 = vsel %vm881, %v883, 0.0
      %v923 = vsel %vm881, %v886, 0.0
      %v924 = vsel %vm881, %v889, 0.0
      %v925 = vsel %vm881, %v892, 0.0
      %v926 = vsel %vm881, %v895, 0.0
      %v927 = vsel %vm881, %v898, 0.0
      %v928 = vsel %vm881, %v901, 0.0
      %v929 = vsel %vm881, %v904, 0.0
      %v930 = vsel %vm881, %v907, 0.0
      %v931 = vsel %vm881, %v910, 0.0
      %932 = vrot.lane.b32.xlu0 %v792, 2
      %v933 = vpop.permute.xlu0 %932
      %934 = vrot.lane.b32.xlu0 %v793, 2
      %v935 = vpop.permute.xlu0 %934
      %936 = vrot.lane.b32.xlu0 %v703, 2
      %v937 = vpop.permute.xlu0 %936
      %938 = vrot.lane.b32.xlu0 %v704, 2
      %v939 = vpop.permute.xlu0 %938
      %940 = vrot.lane.b32.xlu0 %v705, 2
      %v941 = vpop.permute.xlu0 %940
      %942 = vrot.lane.b32.xlu0 %v706, 2
      %v943 = vpop.permute.xlu0 %942
      %944 = vrot.lane.b32.xlu0 %v707, 2
      %v945 = vpop.permute.xlu0 %944
      %946 = vrot.lane.b32.xlu0 %v708, 2
      %v947 = vpop.permute.xlu0 %946
      %948 = vrot.lane.b32.xlu0 %v709, 2
      %v949 = vpop.permute.xlu0 %948
      %950 = vrot.lane.b32.xlu0 %v710, 2
      %v951 = vpop.permute.xlu0 %950
      %952 = vrot.lane.b32.xlu0 %v711, 2
      %v953 = vpop.permute.xlu0 %952
      %954 = vrot.lane.b32.xlu0 %v712, 2
      %v955 = vpop.permute.xlu0 %954
      %956 = vrot.lane.b32.xlu0 %v713, 2
      %v957 = vpop.permute.xlu0 %956
      %958 = vrot.lane.b32.xlu0 %v714, 2
      %v959 = vpop.permute.xlu0 %958
      %960 = vrot.lane.b32.xlu0 %v715, 2
      %v961 = vpop.permute.xlu0 %960
      %962 = vrot.lane.b32.xlu0 %v716, 2
      %v963 = vpop.permute.xlu0 %962
      %964 = vrot.lane.b32.xlu0 %v717, 2
      %v965 = vpop.permute.xlu0 %964
      %966 = vrot.lane.b32.xlu0 %v718, 2
      %v967 = vpop.permute.xlu0 %966
      %968 = vrot.lane.b32.xlu0 %v798, 2
      %v969 = vpop.permute.xlu0 %968
      %970 = vrot.lane.b32.xlu0 %v799, 2
      %v971 = vpop.permute.xlu0 %970
      %1002 = vrot.lane.b32.xlu0 %v884, 4
      %v1003 = vpop.permute.xlu0 %1002
      %1004 = vrot.lane.b32.xlu0 %v922, 4
      %v1005 = vpop.permute.xlu0 %1004
      %1006 = vrot.lane.b32.xlu0 %v887, 4
      %v1007 = vpop.permute.xlu0 %1006
      %1008 = vrot.lane.b32.xlu0 %v923, 4
      %v1009 = vpop.permute.xlu0 %1008
      %1010 = vrot.lane.b32.xlu0 %v890, 4
      %v1011 = vpop.permute.xlu0 %1010
      %1012 = vrot.lane.b32.xlu0 %v924, 4
      %v1013 = vpop.permute.xlu0 %1012
      %1014 = vrot.lane.b32.xlu0 %v893, 4
      %v1015 = vpop.permute.xlu0 %1014
      %1016 = vrot.lane.b32.xlu0 %v925, 4
      %v1017 = vpop.permute.xlu0 %1016
      %1018 = vrot.lane.b32.xlu0 %v896, 4
      %v1019 = vpop.permute.xlu0 %1018
      %1020 = vrot.lane.b32.xlu0 %v926, 4
      %v1021 = vpop.permute.xlu0 %1020
      %1022 = vrot.lane.b32.xlu0 %v899, 4
      %v1023 = vpop.permute.xlu0 %1022
      %1024 = vrot.lane.b32.xlu0 %v927, 4
      %v1025 = vpop.permute.xlu0 %1024
      %1026 = vrot.lane.b32.xlu0 %v902, 4
      %v1027 = vpop.permute.xlu0 %1026
      %1028 = vrot.lane.b32.xlu0 %v928, 4
      %v1029 = vpop.permute.xlu0 %1028
      %1030 = vrot.lane.b32.xlu0 %v905, 4
      %v1031 = vpop.permute.xlu0 %1030
      %1032 = vrot.lane.b32.xlu0 %v929, 4
      %v1033 = vpop.permute.xlu0 %1032
      %1034 = vrot.lane.b32.xlu0 %v908, 4
      %v1035 = vpop.permute.xlu0 %1034
      %1036 = vrot.lane.b32.xlu0 %v930, 4
      %v1037 = vpop.permute.xlu0 %1036
      %1038 = vrot.lane.b32.xlu0 %v911, 4
      %v1039 = vpop.permute.xlu0 %1038
      %1040 = vrot.lane.b32.xlu0 %v931, 4
      %v1041 = vpop.permute.xlu0 %1040
      %vm1062 = vcmask 15360
      %v1063 = vsel %vm1062, %v871, %v933
      %v1064 = vsel %vm1062, %v823, %v935
      %v1065 = vsel %vm1062, %v872, %v937
      %v1066 = vsel %vm1062, %v826, %v939
      %v1067 = vsel %vm1062, %v873, %v941
      %v1068 = vsel %vm1062, %v829, %v943
      %v1069 = vsel %vm1062, %v874, %v945
      %v1070 = vsel %vm1062, %v832, %v947
      %v1071 = vsel %vm1062, %v875, %v949
      %v1072 = vsel %vm1062, %v835, %v951
      %v1073 = vsel %vm1062, %v876, %v953
      %v1074 = vsel %vm1062, %v838, %v955
      %v1075 = vsel %vm1062, %v877, %v957
      %v1076 = vsel %vm1062, %v841, %v959
      %v1077 = vsel %vm1062, %v878, %v961
      %v1078 = vsel %vm1062, %v844, %v963
      %v1079 = vsel %vm1062, %v879, %v965
      %v1080 = vsel %vm1062, %v847, %v967
      %v1081 = vsel %vm1062, %v880, %v969
      %v1082 = vsel %vm1062, %v850, %v971
      %v1083 = vsel %vm437, %v1063, %v1003
      %v1084 = vsel %vm437, %v1064, %v1005
      %v1085 = vsel %vm437, %v1065, %v1007
      %v1086 = vsel %vm437, %v1066, %v1009
      %v1087 = vsel %vm437, %v1067, %v1011
      %v1088 = vsel %vm437, %v1068, %v1013
      %v1089 = vsel %vm437, %v1069, %v1015
      %v1090 = vsel %vm437, %v1070, %v1017
      %v1091 = vsel %vm437, %v1071, %v1019
      %v1092 = vsel %vm437, %v1072, %v1021
      %v1093 = vsel %vm437, %v1073, %v1023
      %v1094 = vsel %vm437, %v1074, %v1025
      %v1095 = vsel %vm437, %v1075, %v1027
      %v1096 = vsel %vm437, %v1076, %v1029
      %v1097 = vsel %vm437, %v1077, %v1031
      %v1098 = vsel %vm437, %v1078, %v1033
      %v1099 = vsel %vm437, %v1079, %v1035
      %v1100 = vsel %vm437, %v1080, %v1037
      %v1101 = vsel %vm437, %v1081, %v1039
      %v1102 = vsel %vm437, %v1082, %v1041
      %v1103 = vpack.c.bf16 %v1084, %v1083
      %v1104 = vpack.c.bf16 %v1086, %v1085
      %v1105 = vpack.c.bf16 %v1088, %v1087
      %v1106 = vpack.c.bf16 %v1090, %v1089
      %v1107 = vpack.c.bf16 %v1092, %v1091
      %v1108 = vpack.c.bf16 %v1094, %v1093
      %v1109 = vpack.c.bf16 %v1096, %v1095
      %v1110 = vpack.c.bf16 %v1098, %v1097
      %v1111 = vpack.c.bf16 %v1100, %v1099
      %v1112 = vpack.c.bf16 %v1102, %v1101
      %v1113 = vld [vmem:[%s4] sm:$0x7]
      %vm1114 = vcmask 48128
      %v1116 = vsel %vm1114, %v1103, 0
      %v1119 = vsel %vm1114, %v1104, 0
      %v1122 = vsel %vm1114, %v1105, 0
      %v1125 = vsel %vm1114, %v1106, 0
      %v1128 = vsel %vm1114, %v1107, 0
      %v1131 = vsel %vm1114, %v1108, 0
      %v1134 = vsel %vm1114, %v1109, 0
      %v1137 = vsel %vm1114, %v1110, 0
      %vm1139 = vcmask 1042432
      %v1141 = vsel %vm1139, %v1113, 0
      %1143 = vmatprep.subr.bf16.mxu0 0
      %1144 = vmatpush1.bf16.msra.mxu0 0
      %1145 = vmatprep.subr.bf16.mxu0 0
      %1146 = vmatpush1.bf16.msra.mxu0 0
      %1147 = vmatprep.subr.bf16.mxu0 0
      %1148 = vmatpush1.bf16.msra.mxu0 0
      %1149 = vmatprep.subr.bf16.mxu0 0
      %1150 = vmatpush1.bf16.msra.mxu0 0
      %1151 = vmatprep.subr.bf16.mxu0 0
      %1152 = vmatpush1.bf16.msra.mxu0 0
      %1153 = vmatprep.subr.bf16.mxu0 0
      %1154 = vmatpush1.bf16.msra.mxu0 0
      %1155 = vmatprep.subr.bf16.mxu0 0
      %1156 = vmatpush1.bf16.msra.mxu0 0
      %1157 = vmatprep.subr.bf16.mxu0 0
      %1158 = vmatpush1.bf16.msra.mxu0 %v1141
      %1159 = vmatprep.subr.bf16.mxu0 0
      %1160 = vmatpush2.bf16.msra.mxu0 0
      %1161 = vmatprep.subr.bf16.mxu0 0
      %1162 = vmatpush2.bf16.msra.mxu0 0
      %1163 = vmatprep.subr.bf16.mxu0 0
      %1164 = vmatpush2.bf16.msra.mxu0 0
      %1165 = vmatprep.subr.bf16.mxu0 0
      %1166 = vmatpush2.bf16.msra.mxu0 0
      %1167 = vmatprep.subr.bf16.mxu0 0
      %1168 = vmatpush2.bf16.msra.mxu0 0
      %1169 = vmatprep.subr.bf16.mxu0 0
      %1170 = vmatpush2.bf16.msra.mxu0 0
      %1171 = vmatprep.subr.bf16.mxu0 0
      %1172 = vmatpush2.bf16.msra.mxu0 0
      %1173 = vmatprep.subr.bf16.mxu0 0
      %1174 = vmatpush2.bf16.msra.mxu0 0
      %1175 = vmatprep.mubr.bf16.mxu0 0
      %1176 = vmatmul.mubr.bf16.gmra.mxu0 %v1116
      %v1177 = vpop.f32.mrf.mxu0
      %v1178 = vadd.f32 0.0, %v1177
      %v1179 = vpop.f32.mrf.mxu0
      %v1180 = vpop.f32.mrf.mxu0
      %v1181 = vadd.f32 0.0, %v1180
      %v1182 = vpop.f32.mrf.mxu0
      %1183 = vmatprep.mubr.bf16.mxu0 0
      %1184 = vmatmul.mubr.bf16.gmra.mxu0 %v1119
      %v1185 = vpop.f32.mrf.mxu0
      %v1186 = vadd.f32 0.0, %v1185
      %v1187 = vpop.f32.mrf.mxu0
      %v1188 = vpop.f32.mrf.mxu0
      %v1189 = vadd.f32 0.0, %v1188
      %v1190 = vpop.f32.mrf.mxu0
      %1191 = vmatprep.mubr.bf16.mxu0 0
      %1192 = vmatmul.mubr.bf16.gmra.mxu0 %v1122
      %v1193 = vpop.f32.mrf.mxu0
      %v1194 = vadd.f32 0.0, %v1193
      %v1195 = vpop.f32.mrf.mxu0
      %v1196 = vpop.f32.mrf.mxu0
      %v1197 = vadd.f32 0.0, %v1196
      %v1198 = vpop.f32.mrf.mxu0
      %1199 = vmatprep.mubr.bf16.mxu0 0
      %1200 = vmatmul.mubr.bf16.gmra.mxu0 %v1125
      %v1201 = vpop.f32.mrf.mxu0
      %v1202 = vadd.f32 0.0, %v1201
      %v1203 = vpop.f32.mrf.mxu0
      %v1204 = vpop.f32.mrf.mxu0
      %v1205 = vadd.f32 0.0, %v1204
      %v1206 = vpop.f32.mrf.mxu0
      %1207 = vmatprep.mubr.bf16.mxu0 0
      %1208 = vmatmul.mubr.bf16.gmra.mxu0 %v1128
      %v1209 = vpop.f32.mrf.mxu0
      %v1210 = vadd.f32 0.0, %v1209
      %v1211 = vpop.f32.mrf.mxu0
      %v1212 = vpop.f32.mrf.mxu0
      %v1213 = vadd.f32 0.0, %v1212
      %v1214 = vpop.f32.mrf.mxu0
      %1215 = vmatprep.mubr.bf16.mxu0 0
      %1216 = vmatmul.mubr.bf16.gmra.mxu0 %v1131
      %v1217 = vpop.f32.mrf.mxu0
      %v1218 = vadd.f32 0.0, %v1217
      %v1219 = vpop.f32.mrf.mxu0
      %v1220 = vpop.f32.mrf.mxu0
      %v1221 = vadd.f32 0.0, %v1220
      %v1222 = vpop.f32.mrf.mxu0
      %1223 = vmatprep.mubr.bf16.mxu0 0
      %1224 = vmatmul.mubr.bf16.gmra.mxu0 %v1134
      %v1225 = vpop.f32.mrf.mxu0
      %v1226 = vadd.f32 0.0, %v1225
      %v1227 = vpop.f32.mrf.mxu0
      %v1228 = vpop.f32.mrf.mxu0
      %v1229 = vadd.f32 0.0, %v1228
      %v1230 = vpop.f32.mrf.mxu0
      %1231 = vmatprep.mubr.bf16.mxu0 0
      %1232 = vmatmul.mubr.bf16.gmra.mxu0 %v1137
      %v1233 = vpop.f32.mrf.mxu0
      %v1234 = vadd.f32 0.0, %v1233
      %v1235 = vpop.f32.mrf.mxu0
      %v1236 = vpop.f32.mrf.mxu0
      %v1237 = vadd.f32 0.0, %v1236
      %v1238 = vpop.f32.mrf.mxu0
      %1239 = vdwg.mxu0
      %1240 = vst.msk [vmem:[#allocation2] sm:$0xff] %vm1062, %v1178
      %1241 = vst.msk [vmem:[#allocation2 + $0x8] sm:$0xff] %vm1062, %v1181
      %1242 = vst.msk [vmem:[#allocation2 + $0x10] sm:$0xff] %vm1062, %v1186
      %1243 = vst.msk [vmem:[#allocation2 + $0x18] sm:$0xff] %vm1062, %v1189
      %1244 = vst.msk [vmem:[#allocation2 + $0x20] sm:$0xff] %vm1062, %v1194
      %1245 = vst.msk [vmem:[#allocation2 + $0x28] sm:$0xff] %vm1062, %v1197
      %1246 = vst.msk [vmem:[#allocation2 + $0x30] sm:$0xff] %vm1062, %v1202
      %1247 = vst.msk [vmem:[#allocation2 + $0x38] sm:$0xff] %vm1062, %v1205
      %1248 = vst.msk [vmem:[#allocation2 + $0x40] sm:$0xff] %vm1062, %v1210
      %1249 = vst.msk [vmem:[#allocation2 + $0x48] sm:$0xff] %vm1062, %v1213
      %1250 = vst.msk [vmem:[#allocation2 + $0x50] sm:$0xff] %vm1062, %v1218
      %1251 = vst.msk [vmem:[#allocation2 + $0x58] sm:$0xff] %vm1062, %v1221
      %1252 = vst.msk [vmem:[#allocation2 + $0x60] sm:$0xff] %vm1062, %v1226
      %1253 = vst.msk [vmem:[#allocation2 + $0x68] sm:$0xff] %vm1062, %v1229
      %1254 = vst.msk [vmem:[#allocation2 + $0x70] sm:$0xff] %vm1062, %v1234
      %1255 = vst.msk [vmem:[#allocation2 + $0x78] sm:$0xff] %vm1062, %v1237
      %v1256 = vld [vmem:[#allocation2] sm:$0xff]
      %v1257 = vld [vmem:[#allocation2 + $0x8] sm:$0xff]
      %v1258 = vld [vmem:[#allocation2 + $0x10] sm:$0xff]
      %v1259 = vld [vmem:[#allocation2 + $0x18] sm:$0xff]
      %v1260 = vld [vmem:[#allocation2 + $0x20] sm:$0xff]
      %v1261 = vld [vmem:[#allocation2 + $0x28] sm:$0xff]
      %v1262 = vld [vmem:[#allocation2 + $0x30] sm:$0xff]
      %v1263 = vld [vmem:[#allocation2 + $0x38] sm:$0xff]
      %v1264 = vld [vmem:[#allocation2 + $0x40] sm:$0xff]
      %v1265 = vld [vmem:[#allocation2 + $0x48] sm:$0xff]
      %v1266 = vld [vmem:[#allocation2 + $0x50] sm:$0xff]
      %v1267 = vld [vmem:[#allocation2 + $0x58] sm:$0xff]
      %v1268 = vld [vmem:[#allocation2 + $0x60] sm:$0xff]
      %v1269 = vld [vmem:[#allocation2 + $0x68] sm:$0xff]
      %v1270 = vld [vmem:[#allocation2 + $0x70] sm:$0xff]
      %v1271 = vld [vmem:[#allocation2 + $0x78] sm:$0xff]
      %s1272 = scalar_lea.vmem %s4, 4
      %v1273 = vld [vmem:[%s1272] sm:$0x7]
      %v1275 = vsel %vm1114, %v1111, 0
      %v1278 = vsel %vm1139, %v1273, 0
      %1280 = vmatprep.subr.bf16.mxu0 0
      %1281 = vmatpush1.bf16.msra.mxu0 0
      %1282 = vmatprep.subr.bf16.mxu0 0
      %1283 = vmatpush1.bf16.msra.mxu0 0
      %1284 = vmatprep.subr.bf16.mxu0 0
      %1285 = vmatpush1.bf16.msra.mxu0 0
      %1286 = vmatprep.subr.bf16.mxu0 0
      %1287 = vmatpush1.bf16.msra.mxu0 0
      %1288 = vmatprep.subr.bf16.mxu0 0
      %1289 = vmatpush1.bf16.msra.mxu0 0
      %1290 = vmatprep.subr.bf16.mxu0 0
      %1291 = vmatpush1.bf16.msra.mxu0 0
      %1292 = vmatprep.subr.bf16.mxu0 0
      %1293 = vmatpush1.bf16.msra.mxu0 0
      %1294 = vmatprep.subr.bf16.mxu0 0
      %1295 = vmatpush1.bf16.msra.mxu0 %v1278
      %1296 = vmatprep.subr.bf16.mxu0 0
      %1297 = vmatpush2.bf16.msra.mxu0 0
      %1298 = vmatprep.subr.bf16.mxu0 0
      %1299 = vmatpush2.bf16.msra.mxu0 0
      %1300 = vmatprep.subr.bf16.mxu0 0
      %1301 = vmatpush2.bf16.msra.mxu0 0
      %1302 = vmatprep.subr.bf16.mxu0 0
      %1303 = vmatpush2.bf16.msra.mxu0 0
      %1304 = vmatprep.subr.bf16.mxu0 0
      %1305 = vmatpush2.bf16.msra.mxu0 0
      %1306 = vmatprep.subr.bf16.mxu0 0
      %1307 = vmatpush2.bf16.msra.mxu0 0
      %1308 = vmatprep.subr.bf16.mxu0 0
      %1309 = vmatpush2.bf16.msra.mxu0 0
      %1310 = vmatprep.subr.bf16.mxu0 0
      %1311 = vmatpush2.bf16.msra.mxu0 0
      %1312 = vmatprep.mubr.bf16.mxu0 0
      %1313 = vmatmul.mubr.bf16.gmra.mxu0 %v1119
      %v1314 = vpop.f32.mrf.mxu0
      %v1315 = vadd.f32 0.0, %v1314
      %v1316 = vpop.f32.mrf.mxu0
      %v1317 = vpop.f32.mrf.mxu0
      %v1318 = vadd.f32 0.0, %v1317
      %v1319 = vpop.f32.mrf.mxu0
      %1320 = vmatprep.mubr.bf16.mxu0 0
      %1321 = vmatmul.mubr.bf16.gmra.mxu0 %v1122
      %v1322 = vpop.f32.mrf.mxu0
      %v1323 = vadd.f32 0.0, %v1322
      %v1324 = vpop.f32.mrf.mxu0
      %v1325 = vpop.f32.mrf.mxu0
      %v1326 = vadd.f32 0.0, %v1325
      %v1327 = vpop.f32.mrf.mxu0
      %1328 = vmatprep.mubr.bf16.mxu0 0
      %1329 = vmatmul.mubr.bf16.gmra.mxu0 %v1125
      %v1330 = vpop.f32.mrf.mxu0
      %v1331 = vadd.f32 0.0, %v1330
      %v1332 = vpop.f32.mrf.mxu0
      %v1333 = vpop.f32.mrf.mxu0
      %v1334 = vadd.f32 0.0, %v1333
      %v1335 = vpop.f32.mrf.mxu0
      %1336 = vmatprep.mubr.bf16.mxu0 0
      %1337 = vmatmul.mubr.bf16.gmra.mxu0 %v1128
      %v1338 = vpop.f32.mrf.mxu0
      %v1339 = vadd.f32 0.0, %v1338
      %v1340 = vpop.f32.mrf.mxu0
      %v1341 = vpop.f32.mrf.mxu0
      %v1342 = vadd.f32 0.0, %v1341
      %v1343 = vpop.f32.mrf.mxu0
      %1344 = vmatprep.mubr.bf16.mxu0 0
      %1345 = vmatmul.mubr.bf16.gmra.mxu0 %v1131
      %v1346 = vpop.f32.mrf.mxu0
      %v1347 = vadd.f32 0.0, %v1346
      %v1348 = vpop.f32.mrf.mxu0
      %v1349 = vpop.f32.mrf.mxu0
      %v1350 = vadd.f32 0.0, %v1349
      %v1351 = vpop.f32.mrf.mxu0
      %1352 = vmatprep.mubr.bf16.mxu0 0
      %1353 = vmatmul.mubr.bf16.gmra.mxu0 %v1134
      %v1354 = vpop.f32.mrf.mxu0
      %v1355 = vadd.f32 0.0, %v1354
      %v1356 = vpop.f32.mrf.mxu0
      %v1357 = vpop.f32.mrf.mxu0
      %v1358 = vadd.f32 0.0, %v1357
      %v1359 = vpop.f32.mrf.mxu0
      %1360 = vmatprep.mubr.bf16.mxu0 0
      %1361 = vmatmul.mubr.bf16.gmra.mxu0 %v1137
      %v1362 = vpop.f32.mrf.mxu0
      %v1363 = vadd.f32 0.0, %v1362
      %v1364 = vpop.f32.mrf.mxu0
      %v1365 = vpop.f32.mrf.mxu0
      %v1366 = vadd.f32 0.0, %v1365
      %v1367 = vpop.f32.mrf.mxu0
      %1368 = vmatprep.mubr.bf16.mxu0 0
      %1369 = vmatmul.mubr.bf16.gmra.mxu0 %v1275
      %v1370 = vpop.f32.mrf.mxu0
      %v1371 = vadd.f32 0.0, %v1370
      %v1372 = vpop.f32.mrf.mxu0
      %v1373 = vpop.f32.mrf.mxu0
      %v1374 = vadd.f32 0.0, %v1373
      %v1375 = vpop.f32.mrf.mxu0
      %1376 = vdwg.mxu0
      %v1377 = vadd.f32 %v1256, %v1315
      %v1378 = vadd.f32 %v1257, %v1318
      %v1379 = vadd.f32 %v1258, %v1323
      %v1380 = vadd.f32 %v1259, %v1326
      %v1381 = vadd.f32 %v1260, %v1331
      %v1382 = vadd.f32 %v1261, %v1334
      %v1383 = vadd.f32 %v1262, %v1339
      %v1384 = vadd.f32 %v1263, %v1342
      %v1385 = vadd.f32 %v1264, %v1347
      %v1386 = vadd.f32 %v1265, %v1350
      %v1387 = vadd.f32 %v1266, %v1355
      %v1388 = vadd.f32 %v1267, %v1358
      %v1389 = vadd.f32 %v1268, %v1363
      %v1390 = vadd.f32 %v1269, %v1366
      %v1391 = vadd.f32 %v1270, %v1371
      %v1392 = vadd.f32 %v1271, %v1374
      %1393 = vst.msk [vmem:[#allocation2] sm:$0xff] %vm1062, %v1377
      %1394 = vst.msk [vmem:[#allocation2 + $0x8] sm:$0xff] %vm1062, %v1378
      %1395 = vst.msk [vmem:[#allocation2 + $0x10] sm:$0xff] %vm1062, %v1379
      %1396 = vst.msk [vmem:[#allocation2 + $0x18] sm:$0xff] %vm1062, %v1380
      %1397 = vst.msk [vmem:[#allocation2 + $0x20] sm:$0xff] %vm1062, %v1381
      %1398 = vst.msk [vmem:[#allocation2 + $0x28] sm:$0xff] %vm1062, %v1382
      %1399 = vst.msk [vmem:[#allocation2 + $0x30] sm:$0xff] %vm1062, %v1383
      %1400 = vst.msk [vmem:[#allocation2 + $0x38] sm:$0xff] %vm1062, %v1384
      %1401 = vst.msk [vmem:[#allocation2 + $0x40] sm:$0xff] %vm1062, %v1385
      %1402 = vst.msk [vmem:[#allocation2 + $0x48] sm:$0xff] %vm1062, %v1386
      %1403 = vst.msk [vmem:[#allocation2 + $0x50] sm:$0xff] %vm1062, %v1387
      %1404 = vst.msk [vmem:[#allocation2 + $0x58] sm:$0xff] %vm1062, %v1388
      %1405 = vst.msk [vmem:[#allocation2 + $0x60] sm:$0xff] %vm1062, %v1389
      %1406 = vst.msk [vmem:[#allocation2 + $0x68] sm:$0xff] %vm1062, %v1390
      %1407 = vst.msk [vmem:[#allocation2 + $0x70] sm:$0xff] %vm1062, %v1391
      %1408 = vst.msk [vmem:[#allocation2 + $0x78] sm:$0xff] %vm1062, %v1392
      %v1409 = vld [vmem:[#allocation2] sm:$0xff]
      %v1410 = vld [vmem:[#allocation2 + $0x8] sm:$0xff]
      %v1411 = vld [vmem:[#allocation2 + $0x10] sm:$0xff]
      %v1412 = vld [vmem:[#allocation2 + $0x18] sm:$0xff]
      %v1413 = vld [vmem:[#allocation2 + $0x20] sm:$0xff]
      %v1414 = vld [vmem:[#allocation2 + $0x28] sm:$0xff]
      %v1415 = vld [vmem:[#allocation2 + $0x30] sm:$0xff]
      %v1416 = vld [vmem:[#allocation2 + $0x38] sm:$0xff]
      %v1417 = vld [vmem:[#allocation2 + $0x40] sm:$0xff]
      %v1418 = vld [vmem:[#allocation2 + $0x48] sm:$0xff]
      %v1419 = vld [vmem:[#allocation2 + $0x50] sm:$0xff]
      %v1420 = vld [vmem:[#allocation2 + $0x58] sm:$0xff]
      %v1421 = vld [vmem:[#allocation2 + $0x60] sm:$0xff]
      %v1422 = vld [vmem:[#allocation2 + $0x68] sm:$0xff]
      %v1423 = vld [vmem:[#allocation2 + $0x70] sm:$0xff]
      %v1424 = vld [vmem:[#allocation2 + $0x78] sm:$0xff]
      %s1425 = scalar_lea.vmem %s4, 8
      %v1426 = vld [vmem:[%s1425] sm:$0x7]
      %v1428 = vsel %vm1114, %v1112, 0
      %v1431 = vsel %vm1139, %v1426, 0
      %1433 = vmatprep.subr.bf16.mxu0 0
      %1434 = vmatpush1.bf16.msra.mxu0 0
      %1435 = vmatprep.subr.bf16.mxu0 0
      %1436 = vmatpush1.bf16.msra.mxu0 0
      %1437 = vmatprep.subr.bf16.mxu0 0
      %1438 = vmatpush1.bf16.msra.mxu0 0
      %1439 = vmatprep.subr.bf16.mxu0 0
      %1440 = vmatpush1.bf16.msra.mxu0 0
      %1441 = vmatprep.subr.bf16.mxu0 0
      %1442 = vmatpush1.bf16.msra.mxu0 0
      %1443 = vmatprep.subr.bf16.mxu0 0
      %1444 = vmatpush1.bf16.msra.mxu0 0
      %1445 = vmatprep.subr.bf16.mxu0 0
      %1446 = vmatpush1.bf16.msra.mxu0 0
      %1447 = vmatprep.subr.bf16.mxu0 0
      %1448 = vmatpush1.bf16.msra.mxu0 %v1431
      %1449 = vmatprep.subr.bf16.mxu0 0
      %1450 = vmatpush2.bf16.msra.mxu0 0
      %1451 = vmatprep.subr.bf16.mxu0 0
      %1452 = vmatpush2.bf16.msra.mxu0 0
      %1453 = vmatprep.subr.bf16.mxu0 0
      %1454 = vmatpush2.bf16.msra.mxu0 0
      %1455 = vmatprep.subr.bf16.mxu0 0
      %1456 = vmatpush2.bf16.msra.mxu0 0
      %1457 = vmatprep.subr.bf16.mxu0 0
      %1458 = vmatpush2.bf16.msra.mxu0 0
      %1459 = vmatprep.subr.bf16.mxu0 0
      %1460 = vmatpush2.bf16.msra.mxu0 0
      %1461 = vmatprep.subr.bf16.mxu0 0
      %1462 = vmatpush2.bf16.msra.mxu0 0
      %1463 = vmatprep.subr.bf16.mxu0 0
      %1464 = vmatpush2.bf16.msra.mxu0 0
      %1465 = vmatprep.mubr.bf16.mxu0 0
      %1466 = vmatmul.mubr.bf16.gmra.mxu0 %v1122
      %v1467 = vpop.f32.mrf.mxu0
      %v1468 = vadd.f32 0.0, %v1467
      %v1469 = vpop.f32.mrf.mxu0
      %v1470 = vpop.f32.mrf.mxu0
      %v1471 = vadd.f32 0.0, %v1470
      %v1472 = vpop.f32.mrf.mxu0
      %1473 = vmatprep.mubr.bf16.mxu0 0
      %1474 = vmatmul.mubr.bf16.gmra.mxu0 %v1125
      %v1475 = vpop.f32.mrf.mxu0
      %v1476 = vadd.f32 0.0, %v1475
      %v1477 = vpop.f32.mrf.mxu0
      %v1478 = vpop.f32.mrf.mxu0
      %v1479 = vadd.f32 0.0, %v1478
      %v1480 = vpop.f32.mrf.mxu0
      %1481 = vmatprep.mubr.bf16.mxu0 0
      %1482 = vmatmul.mubr.bf16.gmra.mxu0 %v1128
      %v1483 = vpop.f32.mrf.mxu0
      %v1484 = vadd.f32 0.0, %v1483
      %v1485 = vpop.f32.mrf.mxu0
      %v1486 = vpop.f32.mrf.mxu0
      %v1487 = vadd.f32 0.0, %v1486
      %v1488 = vpop.f32.mrf.mxu0
      %1489 = vmatprep.mubr.bf16.mxu0 0
      %1490 = vmatmul.mubr.bf16.gmra.mxu0 %v1131
      %v1491 = vpop.f32.mrf.mxu0
      %v1492 = vadd.f32 0.0, %v1491
      %v1493 = vpop.f32.mrf.mxu0
      %v1494 = vpop.f32.mrf.mxu0
      %v1495 = vadd.f32 0.0, %v1494
      %v1496 = vpop.f32.mrf.mxu0
      %1497 = vmatprep.mubr.bf16.mxu0 0
      %1498 = vmatmul.mubr.bf16.gmra.mxu0 %v1134
      %v1499 = vpop.f32.mrf.mxu0
      %v1500 = vadd.f32 0.0, %v1499
      %v1501 = vpop.f32.mrf.mxu0
      %v1502 = vpop.f32.mrf.mxu0
      %v1503 = vadd.f32 0.0, %v1502
      %v1504 = vpop.f32.mrf.mxu0
      %1505 = vmatprep.mubr.bf16.mxu0 0
      %1506 = vmatmul.mubr.bf16.gmra.mxu0 %v1137
      %v1507 = vpop.f32.mrf.mxu0
      %v1508 = vadd.f32 0.0, %v1507
      %v1509 = vpop.f32.mrf.mxu0
      %v1510 = vpop.f32.mrf.mxu0
      %v1511 = vadd.f32 0.0, %v1510
      %v1512 = vpop.f32.mrf.mxu0
      %1513 = vmatprep.mubr.bf16.mxu0 0
      %1514 = vmatmul.mubr.bf16.gmra.mxu0 %v1275
      %v1515 = vpop.f32.mrf.mxu0
      %v1516 = vadd.f32 0.0, %v1515
      %v1517 = vpop.f32.mrf.mxu0
      %v1518 = vpop.f32.mrf.mxu0
      %v1519 = vadd.f32 0.0, %v1518
      %v1520 = vpop.f32.mrf.mxu0
      %1521 = vmatprep.mubr.bf16.mxu0 0
      %1522 = vmatmul.mubr.bf16.gmra.mxu0 %v1428
      %v1523 = vpop.f32.mrf.mxu0
      %v1524 = vadd.f32 0.0, %v1523
      %v1525 = vpop.f32.mrf.mxu0
      %v1526 = vpop.f32.mrf.mxu0
      %v1527 = vadd.f32 0.0, %v1526
      %v1528 = vpop.f32.mrf.mxu0
      %1529 = vdwg.mxu0
      %v1530 = vadd.f32 %v1409, %v1468
      %v1531 = vadd.f32 %v1410, %v1471
      %v1532 = vadd.f32 %v1411, %v1476
      %v1533 = vadd.f32 %v1412, %v1479
      %v1534 = vadd.f32 %v1413, %v1484
      %v1535 = vadd.f32 %v1414, %v1487
      %v1536 = vadd.f32 %v1415, %v1492
      %v1537 = vadd.f32 %v1416, %v1495
      %v1538 = vadd.f32 %v1417, %v1500
      %v1539 = vadd.f32 %v1418, %v1503
      %v1540 = vadd.f32 %v1419, %v1508
      %v1541 = vadd.f32 %v1420, %v1511
      %v1542 = vadd.f32 %v1421, %v1516
      %v1543 = vadd.f32 %v1422, %v1519
      %v1544 = vadd.f32 %v1423, %v1524
      %v1545 = vadd.f32 %v1424, %v1527
      %1546 = vst.msk [vmem:[#allocation2] sm:$0xff] %vm1062, %v1530
      %1547 = vst.msk [vmem:[#allocation2 + $0x8] sm:$0xff] %vm1062, %v1531
      %1548 = vst.msk [vmem:[#allocation2 + $0x10] sm:$0xff] %vm1062, %v1532
      %1549 = vst.msk [vmem:[#allocation2 + $0x18] sm:$0xff] %vm1062, %v1533
      %1550 = vst.msk [vmem:[#allocation2 + $0x20] sm:$0xff] %vm1062, %v1534
      %1551 = vst.msk [vmem:[#allocation2 + $0x28] sm:$0xff] %vm1062, %v1535
      %1552 = vst.msk [vmem:[#allocation2 + $0x30] sm:$0xff] %vm1062, %v1536
      %1553 = vst.msk [vmem:[#allocation2 + $0x38] sm:$0xff] %vm1062, %v1537
      %1554 = vst.msk [vmem:[#allocation2 + $0x40] sm:$0xff] %vm1062, %v1538
      %1555 = vst.msk [vmem:[#allocation2 + $0x48] sm:$0xff] %vm1062, %v1539
      %1556 = vst.msk [vmem:[#allocation2 + $0x50] sm:$0xff] %vm1062, %v1540
      %1557 = vst.msk [vmem:[#allocation2 + $0x58] sm:$0xff] %vm1062, %v1541
      %1558 = vst.msk [vmem:[#allocation2 + $0x60] sm:$0xff] %vm1062, %v1542
      %1559 = vst.msk [vmem:[#allocation2 + $0x68] sm:$0xff] %vm1062, %v1543
      %1560 = vst.msk [vmem:[#allocation2 + $0x70] sm:$0xff] %vm1062, %v1544
      %1561 = vst.msk [vmem:[#allocation2 + $0x78] sm:$0xff] %vm1062, %v1545
      %v1562 = vld [vmem:[#allocation2] sm:$0xff]
      %v1563 = vld [vmem:[#allocation2 + $0x8] sm:$0xff]
      %v1564 = vld [vmem:[#allocation2 + $0x10] sm:$0xff]
      %v1565 = vld [vmem:[#allocation2 + $0x18] sm:$0xff]
      %v1566 = vld [vmem:[#allocation2 + $0x20] sm:$0xff]
      %v1567 = vld [vmem:[#allocation2 + $0x28] sm:$0xff]
      %v1568 = vld [vmem:[#allocation2 + $0x30] sm:$0xff]
      %v1569 = vld [vmem:[#allocation2 + $0x38] sm:$0xff]
      %v1570 = vld [vmem:[#allocation2 + $0x40] sm:$0xff]
      %v1571 = vld [vmem:[#allocation2 + $0x48] sm:$0xff]
      %v1572 = vld [vmem:[#allocation2 + $0x50] sm:$0xff]
      %v1573 = vld [vmem:[#allocation2 + $0x58] sm:$0xff]
      %v1574 = vld [vmem:[#allocation2 + $0x60] sm:$0xff]
      %v1575 = vld [vmem:[#allocation2 + $0x68] sm:$0xff]
      %v1576 = vld [vmem:[#allocation2 + $0x70] sm:$0xff]
      %v1577 = vld [vmem:[#allocation2 + $0x78] sm:$0xff]
      %v1578 = vld [vmem:[%s5] sm:$0x1]
      %v1580 = vlaneseq
      %v1581 = vshrl.u32 %v1580, 7
      %v1582 = vsub.s32 0, %v1581
      %v1583 = vrot.slane %v1578, %v1582
      %v1585 = vadd.f32 %v1562, %v1583
      %v1586 = vadd.f32 %v1563, %v1583
      %v1587 = vadd.f32 %v1564, %v1583
      %v1588 = vadd.f32 %v1565, %v1583
      %v1589 = vadd.f32 %v1566, %v1583
      %v1590 = vadd.f32 %v1567, %v1583
      %v1591 = vadd.f32 %v1568, %v1583
      %v1592 = vadd.f32 %v1569, %v1583
      %v1593 = vadd.f32 %v1570, %v1583
      %v1594 = vadd.f32 %v1571, %v1583
      %v1595 = vadd.f32 %v1572, %v1583
      %v1596 = vadd.f32 %v1573, %v1583
      %v1597 = vadd.f32 %v1574, %v1583
      %v1598 = vadd.f32 %v1575, %v1583
      %v1599 = vadd.f32 %v1576, %v1583
      %v1600 = vadd.f32 %v1577, %v1583
      %v1601 = vpack.c.bf16 %v1586, %v1585
      %v1602 = vpack.c.bf16 %v1588, %v1587
      %v1603 = vpack.c.bf16 %v1590, %v1589
      %v1604 = vpack.c.bf16 %v1592, %v1591
      %v1605 = vpack.c.bf16 %v1594, %v1593
      %v1606 = vpack.c.bf16 %v1596, %v1595
      %v1607 = vpack.c.bf16 %v1598, %v1597
      %v1608 = vpack.c.bf16 %v1600, %v1599
      %v1609 = vld [vmem:[%s6] sm:$0x1]
      %v1610 = vld [vmem:[%s7] sm:$0x1]
      %v1612 = vlaneseq
      %v1613 = vshrl.u32 %v1612, 7
      %v1614 = vsub.s32 0, %v1613
      %v1615 = vrot.slane %v1610, %v1614
      %v1618 = vsel %vm1062, %v1601, 0
      %v1621 = vsel %vm1062, %v1602, 0
      %v1624 = vsel %vm1062, %v1603, 0
      %v1627 = vsel %vm1062, %v1604, 0
      %v1630 = vsel %vm1062, %v1605, 0
      %v1633 = vsel %vm1062, %v1606, 0
      %v1636 = vsel %vm1062, %v1607, 0
      %v1639 = vsel %vm1062, %v1608, 0
      %v1642 = vsel %vm820, %v1609, 0
      %1644 = vmatprep.subr.bf16.mxu0 0
      %1645 = vmatpush1.bf16.msra.mxu0 0
      %1646 = vmatprep.subr.bf16.mxu0 0
      %1647 = vmatpush1.bf16.msra.mxu0 0
      %1648 = vmatprep.subr.bf16.mxu0 0
      %1649 = vmatpush1.bf16.msra.mxu0 0
      %1650 = vmatprep.subr.bf16.mxu0 0
      %1651 = vmatpush1.bf16.msra.mxu0 0
      %1652 = vmatprep.subr.bf16.mxu0 0
      %1653 = vmatpush1.bf16.msra.mxu0 0
      %1654 = vmatprep.subr.bf16.mxu0 0
      %1655 = vmatpush1.bf16.msra.mxu0 0
      %1656 = vmatprep.subr.bf16.mxu0 0
      %1657 = vmatpush1.bf16.msra.mxu0 0
      %1658 = vmatprep.subr.bf16.mxu0 0
      %1659 = vmatpush1.bf16.msra.mxu0 %v1642
      %1660 = vmatprep.subr.bf16.mxu0 0
      %1661 = vmatpush2.bf16.msra.mxu0 0
      %1662 = vmatprep.subr.bf16.mxu0 0
      %1663 = vmatpush2.bf16.msra.mxu0 0
      %1664 = vmatprep.subr.bf16.mxu0 0
      %1665 = vmatpush2.bf16.msra.mxu0 0
      %1666 = vmatprep.subr.bf16.mxu0 0
      %1667 = vmatpush2.bf16.msra.mxu0 0
      %1668 = vmatprep.subr.bf16.mxu0 0
      %1669 = vmatpush2.bf16.msra.mxu0 0
      %1670 = vmatprep.subr.bf16.mxu0 0
      %1671 = vmatpush2.bf16.msra.mxu0 0
      %1672 = vmatprep.subr.bf16.mxu0 0
      %1673 = vmatpush2.bf16.msra.mxu0 0
      %1674 = vmatprep.subr.bf16.mxu0 0
      %1675 = vmatpush2.bf16.msra.mxu0 0
      %1676 = vmatprep.mubr.bf16.mxu0 0
      %1677 = vmatmul.mubr.bf16.gmra.mxu0 %v1618
      %v1678 = vpop.f32.mrf.mxu0
      %v1679 = vadd.f32 %v1615, %v1678
      %v1680 = vpop.f32.mrf.mxu0
      %v1681 = vpop.f32.mrf.mxu0
      %v1682 = vadd.f32 %v1615, %v1681
      %v1683 = vpop.f32.mrf.mxu0
      %1684 = vmatprep.mubr.bf16.mxu0 0
      %1685 = vmatmul.mubr.bf16.gmra.mxu0 %v1621
      %v1686 = vpop.f32.mrf.mxu0
      %v1687 = vadd.f32 %v1615, %v1686
      %v1688 = vpop.f32.mrf.mxu0
      %v1689 = vpop.f32.mrf.mxu0
      %v1690 = vadd.f32 %v1615, %v1689
      %v1691 = vpop.f32.mrf.mxu0
      %1692 = vmatprep.mubr.bf16.mxu0 0
      %1693 = vmatmul.mubr.bf16.gmra.mxu0 %v1624
      %v1694 = vpop.f32.mrf.mxu0
      %v1695 = vadd.f32 %v1615, %v1694
      %v1696 = vpop.f32.mrf.mxu0
      %v1697 = vpop.f32.mrf.mxu0
      %v1698 = vadd.f32 %v1615, %v1697
      %v1699 = vpop.f32.mrf.mxu0
      %1700 = vmatprep.mubr.bf16.mxu0 0
      %1701 = vmatmul.mubr.bf16.gmra.mxu0 %v1627
      %v1702 = vpop.f32.mrf.mxu0
      %v1703 = vadd.f32 %v1615, %v1702
      %v1704 = vpop.f32.mrf.mxu0
      %v1705 = vpop.f32.mrf.mxu0
      %v1706 = vadd.f32 %v1615, %v1705
      %v1707 = vpop.f32.mrf.mxu0
      %1708 = vmatprep.mubr.bf16.mxu0 0
      %1709 = vmatmul.mubr.bf16.gmra.mxu0 %v1630
      %v1710 = vpop.f32.mrf.mxu0
      %v1711 = vadd.f32 %v1615, %v1710
      %v1712 = vpop.f32.mrf.mxu0
      %v1713 = vpop.f32.mrf.mxu0
      %v1714 = vadd.f32 %v1615, %v1713
      %v1715 = vpop.f32.mrf.mxu0
      %1716 = vmatprep.mubr.bf16.mxu0 0
      %1717 = vmatmul.mubr.bf16.gmra.mxu0 %v1633
      %v1718 = vpop.f32.mrf.mxu0
      %v1719 = vadd.f32 %v1615, %v1718
      %v1720 = vpop.f32.mrf.mxu0
      %v1721 = vpop.f32.mrf.mxu0
      %v1722 = vadd.f32 %v1615, %v1721
      %v1723 = vpop.f32.mrf.mxu0
      %1724 = vmatprep.mubr.bf16.mxu0 0
      %1725 = vmatmul.mubr.bf16.gmra.mxu0 %v1636
      %v1726 = vpop.f32.mrf.mxu0
      %v1727 = vadd.f32 %v1615, %v1726
      %v1728 = vpop.f32.mrf.mxu0
      %v1729 = vpop.f32.mrf.mxu0
      %v1730 = vadd.f32 %v1615, %v1729
      %v1731 = vpop.f32.mrf.mxu0
      %1732 = vmatprep.mubr.bf16.mxu0 0
      %1733 = vmatmul.mubr.bf16.gmra.mxu0 %v1639
      %v1734 = vpop.f32.mrf.mxu0
      %v1735 = vadd.f32 %v1615, %v1734
      %v1736 = vpop.f32.mrf.mxu0
      %v1737 = vpop.f32.mrf.mxu0
      %v1738 = vadd.f32 %v1615, %v1737
      %v1739 = vpop.f32.mrf.mxu0
      %1740 = vdwg.mxu0
      %v1741 = vld [vmem:[#allocation3] sm:$0xff]
      %v1742 = vld [vmem:[#allocation3 + $0x8] sm:$0xff]
      %v1743 = vld [vmem:[#allocation3 + $0x10] sm:$0xff]
      %v1744 = vld [vmem:[#allocation3 + $0x18] sm:$0xff]
      %v1745 = vld [vmem:[#allocation3 + $0x20] sm:$0xff]
      %v1746 = vld [vmem:[#allocation3 + $0x28] sm:$0xff]
      %v1747 = vld [vmem:[#allocation3 + $0x30] sm:$0xff]
      %v1748 = vld [vmem:[#allocation3 + $0x38] sm:$0xff]
      %v1749 = vld [vmem:[#allocation3 + $0x40] sm:$0xff]
      %v1750 = vld [vmem:[#allocation3 + $0x48] sm:$0xff]
      %v1751 = vld [vmem:[#allocation3 + $0x50] sm:$0xff]
      %v1752 = vld [vmem:[#allocation3 + $0x58] sm:$0xff]
      %v1753 = vld [vmem:[#allocation3 + $0x60] sm:$0xff]
      %v1754 = vld [vmem:[#allocation3 + $0x68] sm:$0xff]
      %v1755 = vld [vmem:[#allocation3 + $0x70] sm:$0xff]
      %v1756 = vld [vmem:[#allocation3 + $0x78] sm:$0xff]
      %v1757 = vadd.f32 %v1741, %v1679
      %v1758 = vadd.f32 %v1742, %v1682
      %v1759 = vadd.f32 %v1743, %v1687
      %v1760 = vadd.f32 %v1744, %v1690
      %v1761 = vadd.f32 %v1745, %v1695
      %v1762 = vadd.f32 %v1746, %v1698
      %v1763 = vadd.f32 %v1747, %v1703
      %v1764 = vadd.f32 %v1748, %v1706
      %v1765 = vadd.f32 %v1749, %v1711
      %v1766 = vadd.f32 %v1750, %v1714
      %v1767 = vadd.f32 %v1751, %v1719
      %v1768 = vadd.f32 %v1752, %v1722
      %v1769 = vadd.f32 %v1753, %v1727
      %v1770 = vadd.f32 %v1754, %v1730
      %v1771 = vadd.f32 %v1755, %v1735
      %v1772 = vadd.f32 %v1756, %v1738
      %v1773 = vmax.f32 %v1757, 0.0
      %v1774 = vmax.f32 %v1758, 0.0
      %v1775 = vmax.f32 %v1759, 0.0
      %v1776 = vmax.f32 %v1760, 0.0
      %v1777 = vmax.f32 %v1761, 0.0
      %v1778 = vmax.f32 %v1762, 0.0
      %v1779 = vmax.f32 %v1763, 0.0
      %v1780 = vmax.f32 %v1764, 0.0
      %v1781 = vmax.f32 %v1765, 0.0
      %v1782 = vmax.f32 %v1766, 0.0
      %v1783 = vmax.f32 %v1767, 0.0
      %v1784 = vmax.f32 %v1768, 0.0
      %v1785 = vmax.f32 %v1769, 0.0
      %v1786 = vmax.f32 %v1770, 0.0
      %v1787 = vmax.f32 %v1771, 0.0
      %v1788 = vmax.f32 %v1772, 0.0
      %v1789 = vmin.f32 %v1773, 6.0
      %v1790 = vmin.f32 %v1774, 6.0
      %v1791 = vmin.f32 %v1775, 6.0
      %v1792 = vmin.f32 %v1776, 6.0
      %v1793 = vmin.f32 %v1777, 6.0
      %v1794 = vmin.f32 %v1778, 6.0
      %v1795 = vmin.f32 %v1779, 6.0
      %v1796 = vmin.f32 %v1780, 6.0
      %v1797 = vmin.f32 %v1781, 6.0
      %v1798 = vmin.f32 %v1782, 6.0
      %v1799 = vmin.f32 %v1783, 6.0
      %v1800 = vmin.f32 %v1784, 6.0
      %v1801 = vmin.f32 %v1785, 6.0
      %v1802 = vmin.f32 %v1786, 6.0
      %v1803 = vmin.f32 %v1787, 6.0
      %v1804 = vmin.f32 %v1788, 6.0
      %1805 = vst.msk [vmem:[%s409] sm:$0xff] %vm437, %v1789
      %1806 = vst.msk [vmem:[%s409 + $0x8] sm:$0xff] %vm437, %v1790
      %1807 = vst.msk [vmem:[%s409 + $0x10] sm:$0xff] %vm437, %v1791
      %1808 = vst.msk [vmem:[%s409 + $0x18] sm:$0xff] %vm437, %v1792
      %1809 = vst.msk [vmem:[%s409 + $0x20] sm:$0xff] %vm437, %v1793
      %1810 = vst.msk [vmem:[%s409 + $0x28] sm:$0xff] %vm437, %v1794
      %1811 = vst.msk [vmem:[%s409 + $0x30] sm:$0xff] %vm437, %v1795
      %1812 = vst.msk [vmem:[%s409 + $0x38] sm:$0xff] %vm437, %v1796
      %1813 = vst.msk [vmem:[%s409 + $0x40] sm:$0xff] %vm437, %v1797
      %1814 = vst.msk [vmem:[%s409 + $0x48] sm:$0xff] %vm437, %v1798
      %1815 = vst.msk [vmem:[%s409 + $0x50] sm:$0xff] %vm437, %v1799
      %1816 = vst.msk [vmem:[%s409 + $0x58] sm:$0xff] %vm437, %v1800
      %1817 = vst.msk [vmem:[%s409 + $0x60] sm:$0xff] %vm437, %v1801
      %1818 = vst.msk [vmem:[%s409 + $0x68] sm:$0xff] %vm437, %v1802
      %1819 = vst.msk [vmem:[%s409 + $0x70] sm:$0xff] %vm437, %v1803
      %1820 = vst.msk [vmem:[%s409 + $0x78] sm:$0xff] %vm437, %v1804
      %s1821 = smul.u32 8, %s25
      %p1822 = scmp.lt.s32.totalorder %s24, 1
      %s1823 = scalar_select %p1822, %s24, 1
      %p1824 = scmp.lt.s32.totalorder %s1821, 15
      %s1825 = scalar_select %p1824, %s1821, 15
      %s1826 = smul.addr %s1825, 2
      %s1827 = smul.addr %s1823, 32
      %s1828 = sadd.s32 %s1826, %s1827
      %s1829 = smul.addr %s1828, 8
      %s1830 = scalar_lea.vmem %s9, %s1829
      // Predicated region
      $region57: #{_lambda_.1} parent=55 // pred_check
        %p1831 = pneg %p255
      $region58: #{_lambda_.1} parent=55 // pred_check_branch
        %1833 = sbr.rel (%p1831) target = $region60
      $region59: #{_lambda_.1} parent=55 // pred_region
        %s1834 = smul.u32 8, %s25
      $region60: #{_lambda_.1} parent=55 // pred_fallthru
        _
    $region56: #{_lambda_.1} parent=5 // pred_fallthru
      _
    %p1835 = scmp.le.s32.totalorder 2, %s15
    // Predicated region
    $region61: #{_lambda_.1} parent=5 // pred_check
      %p1836 = pneg %p1835
    $region62: #{_lambda_.1} parent=5 // pred_check_branch
      %1838 = sbr.rel (%p1836) target = $region64
    $region63: #{_lambda_.1} parent=5 // pred_region
      %s1839 = ssub.s32 %s15, 2
      // Predicated region
      $region65: #{_lambda_.1} parent=63 // pred_check
        %p1840 = pneg %p261
      $region66: #{_lambda_.1} parent=63 // pred_check_branch
        %1842 = sbr.rel (%p1840) target = $region68
      $region67: #{_lambda_.1} parent=63 // pred_region
        %s1843 = smul.u32 8, %s27
        %p1844 = scmp.lt.s32.totalorder %s26, 1
        %s1845 = scalar_select %p1844, %s26, 1
        %p1846 = scmp.lt.s32.totalorder %s1843, 15
        %s1847 = scalar_select %p1846, %s1843, 15
        %s1848 = smul.addr %s1847, 2
        %s1849 = smul.addr %s1845, 32
        %s1850 = sadd.s32 %s1848, %s1849
        %s1851 = smul.addr %s1850, 8
        %s1852 = scalar_lea.vmem %s9, %s1851
      $region68: #{_lambda_.1} parent=63 // pred_fallthru
        _
    $region64: #{_lambda_.1} parent=5 // pred_fallthru
      _
  $region6: #{_lambda_.1} parent=0 // loop_footer
    %s19 = sadd.s32 1, %s15
  $region7: #{_lambda_.1} parent=0 // loop_footer_branch
    %14 = sbr.rel target = $region3
  $region8: #{_lambda_.1} parent=0 // loop_exit
    _

</llo_original>
